<compile_context>
chip_gen: v7x
topology: tpu7x:2x2x1
jax: 0.10.0
libtpu: 0.0.40
codegen_flags: <defaults>
</compile_context>

<pallas_src>
import jax
import jax.numpy as jnp
from jax.experimental import pallas as pl
from jax.experimental.pallas import tpu as pltpu

IN_FEATURES = 9
HIDDEN = 512
OUT_FEATURES = 2
OUT_PAD = 128  # lane-dense padded output width


def _round_up(n, m):
    return ((n + m - 1) // m) * m


def _select_tb(batch, tb_override=None):
    """Pick the batch tile per the perf review (padding-aware, dual-core aware)."""
    b8 = _round_up(max(batch, 1), 8)
    if tb_override is not None:
        return min(tb_override, b8)
    if b8 <= 128:
        # Tiny batch: one block equal to the (8-aligned) padded batch.
        return b8
    # Minimize batch padding (v5e), tie-break toward larger tiles (fewer
    # ~600-cycle grid steps on v6e/v7x).
    candidates = (512, 256, 128)
    tb = min(candidates,
             key=lambda t: (_round_up(b8, t) - b8, candidates.index(t)))
    # Keep >= 2 grid steps so the "parallel" axis can shard across v7x's
    # two TensorCores (halving the tile never increases total padding).
    while tb > 128 and _round_up(b8, tb) // tb < 2:
        tb //= 2
    return tb


def _mlp_kernel(x_ref,
                w1_ref, b1_ref,
                w2_ref, b2_ref,
                w3_ref, b3_ref,
                w4_ref, b4_ref,
                o_ref):
    """One batch tile through the whole network (weights resident in VMEM)."""
    # fc1 + ReLU  (dropout = identity in eval mode).
    # K=9 is zero-padded to the MXU K tile; kept on the MXU (see header note).
    h = jnp.dot(x_ref[...], w1_ref[...], preferred_element_type=jnp.float32)
    h = jnp.maximum(h + b1_ref[...], 0.0).astype(jnp.bfloat16)
    # fc2 + ReLU
    h = jnp.dot(h, w2_ref[...], preferred_element_type=jnp.float32)
    h = jnp.maximum(h + b2_ref[...], 0.0).astype(jnp.bfloat16)
    # fc3 + ReLU
    h = jnp.dot(h, w3_ref[...], preferred_element_type=jnp.float32)
    h = jnp.maximum(h + b3_ref[...], 0.0).astype(jnp.bfloat16)
    # fc4 (output padded to 128 lanes -> unmasked stores, bf16 writeback)
    out = jnp.dot(h, w4_ref[...], preferred_element_type=jnp.float32) + b4_ref[...]
    o_ref[...] = out.astype(o_ref.dtype)


def net_forward(x, params, *, tb=None):
    """x: [B, 9] float32. params: bf16 weights [in, out(_pad)], f32 biases [1, out(_pad)].

    Returns f32 logits [B, 2].
    """
    B = x.shape[0]
    tb_sel = _select_tb(B, tb)
    B_pad = _round_up(B, tb_sel)

    x_p = x.astype(jnp.bfloat16)
    if B_pad != B:
        x_p = jnp.pad(x_p, ((0, B_pad - B), (0, 0)))

    w1, b1 = params["w1"], params["b1"]
    w2, b2 = params["w2"], params["b2"]
    w3, b3 = params["w3"], params["b3"]
    w4, b4 = params["w4"], params["b4"]

    grid = (B_pad // tb_sel,)

    def const(shape):
        # Weights/biases: same block every grid step -> stay resident in VMEM.
        return pl.BlockSpec(shape, lambda i: (0, 0))

    flops = 2 * B_pad * (IN_FEATURES * HIDDEN
                         + HIDDEN * HIDDEN
                         + HIDDEN * HIDDEN
                         + HIDDEN * OUT_PAD)
    weight_bytes = sum(int(a.size) * a.dtype.itemsize
                       for a in (w1, b1, w2, b2, w3, b3, w4, b4))
    bytes_accessed = weight_bytes + B_pad * (IN_FEATURES * 2 + OUT_PAD * 2)

    out = pl.pallas_call(
        _mlp_kernel,
        out_shape=jax.ShapeDtypeStruct((B_pad, OUT_PAD), jnp.bfloat16),
        grid=grid,
        in_specs=[
            pl.BlockSpec((tb_sel, IN_FEATURES), lambda i: (i, 0)),
            const(w1.shape), const(b1.shape),
            const(w2.shape), const(b2.shape),
            const(w3.shape), const(b3.shape),
            const(w4.shape), const(b4.shape),
        ],
        out_specs=pl.BlockSpec((tb_sel, OUT_PAD), lambda i: (i, 0)),
        compiler_params=pltpu.CompilerParams(
            dimension_semantics=("parallel",),
            vmem_limit_bytes=16 << 20,
        ),
        cost_estimate=pl.CostEstimate(
            flops=flops, transcendentals=0, bytes_accessed=bytes_accessed),
    )(x_p, w1, b1, w2, b2, w3, b3, w4, b4)

    return out[:B, :OUT_FEATURES].astype(jnp.float32)


def init_params(key):
    """PyTorch-Linear-style init: U(-1/sqrt(fan_in), 1/sqrt(fan_in)).

    Weights stored as [in, out] in bf16 (kernel computes y = x @ W + b);
    fc4 is padded with zero columns to OUT_PAD for a lane-dense output.
    Biases kept in f32 (added after the f32-accumulating matmul).
    """
    dims = [(IN_FEATURES, HIDDEN), (HIDDEN, HIDDEN),
            (HIDDEN, HIDDEN), (HIDDEN, OUT_FEATURES)]
    params = {}
    keys = jax.random.split(key, 2 * len(dims))
    for i, (fan_in, fan_out) in enumerate(dims):
        bound = 1.0 / jnp.sqrt(jnp.float32(fan_in))
        w = jax.random.uniform(keys[2 * i], (fan_in, fan_out),
                               minval=-bound, maxval=bound, dtype=jnp.float32)
        b = jax.random.uniform(keys[2 * i + 1], (1, fan_out),
                               minval=-bound, maxval=bound, dtype=jnp.float32)
        if fan_out == OUT_FEATURES:  # pad fc4 to 128 lanes (zeros are sliced off)
            w = jnp.pad(w, ((0, 0), (0, OUT_PAD - fan_out)))
            b = jnp.pad(b, ((0, 0), (0, OUT_PAD - fan_out)))
        params[f"w{i+1}"] = w.astype(jnp.bfloat16)
        params[f"b{i+1}"] = b  # f32
    return params


def _reference(x, p):
    """Pure-JAX reference with the same bf16-compute / f32-accumulate recipe."""
    h = x.astype(jnp.bfloat16)
    h = jnp.maximum(jnp.dot(h, p["w1"], preferred_element_type=jnp.float32)
                    + p["b1"], 0.0).astype(jnp.bfloat16)
    h = jnp.maximum(jnp.dot(h, p["w2"], preferred_element_type=jnp.float32)
                    + p["b2"], 0.0).astype(jnp.bfloat16)
    h = jnp.maximum(jnp.dot(h, p["w3"], preferred_element_type=jnp.float32)
                    + p["b3"], 0.0).astype(jnp.bfloat16)
    out = jnp.dot(h, p["w4"], preferred_element_type=jnp.float32) + p["b4"]
    return out[:, :OUT_FEATURES]


if __name__ == "__main__":
    key = jax.random.PRNGKey(0)
    k_params, k_x, k_x2 = jax.random.split(key, 3)

    params = init_params(k_params)

    # Primary small-shape check (batch=8): single-block path.
    x = jax.random.normal(k_x, (8, IN_FEATURES), dtype=jnp.float32)
    out = jax.block_until_ready(net_forward(x, params))
    ref = _reference(x, params)
    assert out.shape == (8, OUT_FEATURES)
    assert bool(jnp.all(jnp.isfinite(out))), "non-finite output"
    assert jnp.allclose(out, ref, atol=2e-2, rtol=2e-2), "mismatch vs JAX reference"

    # Secondary check (batch=136): exercises the multi-step grid + padding path.
    x2 = jax.random.normal(k_x2, (136, IN_FEATURES), dtype=jnp.float32)
    out2 = jax.block_until_ready(net_forward(x2, params))
    ref2 = _reference(x2, params)
    assert out2.shape == (136, OUT_FEATURES)
    assert bool(jnp.all(jnp.isfinite(out2))), "non-finite output (grid path)"
    assert jnp.allclose(out2, ref2, atol=2e-2, rtol=2e-2), "mismatch (grid path)"

    print("KERNEL_OK")
</pallas_src>

<mosaic_0001>
module attributes {stable_mosaic.version = 11 : i64} {
  func.func @_mlp_kernel(%arg0: i32, %arg1: memref<8x9xbf16, #tpu.memory_space<vmem>>, %arg2: memref<9x512xbf16, #tpu.memory_space<vmem>>, %arg3: memref<1x512xf32, #tpu.memory_space<vmem>>, %arg4: memref<512x512xbf16, #tpu.memory_space<vmem>>, %arg5: memref<1x512xf32, #tpu.memory_space<vmem>>, %arg6: memref<512x512xbf16, #tpu.memory_space<vmem>>, %arg7: memref<1x512xf32, #tpu.memory_space<vmem>>, %arg8: memref<512x128xbf16, #tpu.memory_space<vmem>>, %arg9: memref<1x128xf32, #tpu.memory_space<vmem>>, %arg10: memref<8x128xbf16, #tpu.memory_space<vmem>>) attributes {dimension_semantics = [#tpu.dimension_semantics<parallel>], iteration_bounds = array<i64: 1>, scalar_prefetch = 0 : i64, scratch_operands = 0 : i64, tpu.core_type = #tpu.core_type<tc>, window_params = [{transform_indices = @transform_0, window_bounds = array<i64: 8, 9>}, {pipeline_mode = #tpu.pipeline_mode<synchronous>, transform_indices = @transform_1, window_bounds = array<i64: 9, 512>}, {pipeline_mode = #tpu.pipeline_mode<synchronous>, transform_indices = @transform_2, window_bounds = array<i64: 1, 512>}, {pipeline_mode = #tpu.pipeline_mode<synchronous>, transform_indices = @transform_3, window_bounds = array<i64: 512, 512>}, {pipeline_mode = #tpu.pipeline_mode<synchronous>, transform_indices = @transform_4, window_bounds = array<i64: 1, 512>}, {pipeline_mode = #tpu.pipeline_mode<synchronous>, transform_indices = @transform_5, window_bounds = array<i64: 512, 512>}, {pipeline_mode = #tpu.pipeline_mode<synchronous>, transform_indices = @transform_6, window_bounds = array<i64: 1, 512>}, {pipeline_mode = #tpu.pipeline_mode<synchronous>, transform_indices = @transform_7, window_bounds = array<i64: 512, 128>}, {pipeline_mode = #tpu.pipeline_mode<synchronous>, transform_indices = @transform_8, window_bounds = array<i64: 1, 128>}, {transform_indices = @transform_9, window_bounds = array<i64: 8, 128>}]} {
    %c0 = arith.constant 0 : index
    %c0_0 = arith.constant 0 : index
    %0 = vector.load %arg1[%c0, %c0_0] : memref<8x9xbf16, #tpu.memory_space<vmem>>, vector<8x9xbf16>
    %c0_1 = arith.constant 0 : index
    %c0_2 = arith.constant 0 : index
    %1 = vector.load %arg2[%c0_1, %c0_2] : memref<9x512xbf16, #tpu.memory_space<vmem>>, vector<9x512xbf16>
    %cst = arith.constant dense<0.000000e+00> : vector<8x512xf32>
    %2 = tpu.matmul %0, %1, %cst {dimension_numbers = #tpu.dot_dimension_numbers<[1], [0], [0], [1], [0, 0, 1, 1], [], []>} : vector<8x9xbf16>, vector<9x512xbf16>, vector<8x512xf32> -> vector<8x512xf32>
    %c0_3 = arith.constant 0 : index
    %c0_4 = arith.constant 0 : index
    %3 = vector.load %arg3[%c0_3, %c0_4] : memref<1x512xf32, #tpu.memory_space<vmem>>, vector<1x512xf32>
    %4 = vector.broadcast %3 : vector<1x512xf32> to vector<8x512xf32>
    %5 = arith.addf %2, %4 : vector<8x512xf32>
    %cst_5 = arith.constant 0.000000e+00 : f32
    %6 = vector.broadcast %cst_5 : f32 to vector<8x512xf32>
    %7 = arith.maximumf %5, %6 : vector<8x512xf32>
    %8 = arith.truncf %7 : vector<8x512xf32> to vector<8x512xbf16>
    %c0_6 = arith.constant 0 : index
    %c0_7 = arith.constant 0 : index
    %9 = vector.load %arg4[%c0_6, %c0_7] : memref<512x512xbf16, #tpu.memory_space<vmem>>, vector<512x512xbf16>
    %cst_8 = arith.constant dense<0.000000e+00> : vector<8x512xf32>
    %10 = tpu.matmul %8, %9, %cst_8 {dimension_numbers = #tpu.dot_dimension_numbers<[1], [0], [0], [1], [0, 0, 1, 1], [], []>} : vector<8x512xbf16>, vector<512x512xbf16>, vector<8x512xf32> -> vector<8x512xf32>
    %c0_9 = arith.constant 0 : index
    %c0_10 = arith.constant 0 : index
    %11 = vector.load %arg5[%c0_9, %c0_10] : memref<1x512xf32, #tpu.memory_space<vmem>>, vector<1x512xf32>
    %12 = vector.broadcast %11 : vector<1x512xf32> to vector<8x512xf32>
    %13 = arith.addf %10, %12 : vector<8x512xf32>
    %cst_11 = arith.constant 0.000000e+00 : f32
    %14 = vector.broadcast %cst_11 : f32 to vector<8x512xf32>
    %15 = arith.maximumf %13, %14 : vector<8x512xf32>
    %16 = arith.truncf %15 : vector<8x512xf32> to vector<8x512xbf16>
    %c0_12 = arith.constant 0 : index
    %c0_13 = arith.constant 0 : index
    %17 = vector.load %arg6[%c0_12, %c0_13] : memref<512x512xbf16, #tpu.memory_space<vmem>>, vector<512x512xbf16>
    %cst_14 = arith.constant dense<0.000000e+00> : vector<8x512xf32>
    %18 = tpu.matmul %16, %17, %cst_14 {dimension_numbers = #tpu.dot_dimension_numbers<[1], [0], [0], [1], [0, 0, 1, 1], [], []>} : vector<8x512xbf16>, vector<512x512xbf16>, vector<8x512xf32> -> vector<8x512xf32>
    %c0_15 = arith.constant 0 : index
    %c0_16 = arith.constant 0 : index
    %19 = vector.load %arg7[%c0_15, %c0_16] : memref<1x512xf32, #tpu.memory_space<vmem>>, vector<1x512xf32>
    %20 = vector.broadcast %19 : vector<1x512xf32> to vector<8x512xf32>
    %21 = arith.addf %18, %20 : vector<8x512xf32>
    %cst_17 = arith.constant 0.000000e+00 : f32
    %22 = vector.broadcast %cst_17 : f32 to vector<8x512xf32>
    %23 = arith.maximumf %21, %22 : vector<8x512xf32>
    %24 = arith.truncf %23 : vector<8x512xf32> to vector<8x512xbf16>
    %c0_18 = arith.constant 0 : index
    %c0_19 = arith.constant 0 : index
    %25 = vector.load %arg8[%c0_18, %c0_19] : memref<512x128xbf16, #tpu.memory_space<vmem>>, vector<512x128xbf16>
    %cst_20 = arith.constant dense<0.000000e+00> : vector<8x128xf32>
    %26 = tpu.matmul %24, %25, %cst_20 {dimension_numbers = #tpu.dot_dimension_numbers<[1], [0], [0], [1], [0, 0, 1, 1], [], []>} : vector<8x512xbf16>, vector<512x128xbf16>, vector<8x128xf32> -> vector<8x128xf32>
    %c0_21 = arith.constant 0 : index
    %c0_22 = arith.constant 0 : index
    %27 = vector.load %arg9[%c0_21, %c0_22] : memref<1x128xf32, #tpu.memory_space<vmem>>, vector<1x128xf32>
    %28 = vector.broadcast %27 : vector<1x128xf32> to vector<8x128xf32>
    %29 = arith.addf %26, %28 : vector<8x128xf32>
    %30 = arith.truncf %29 : vector<8x128xf32> to vector<8x128xbf16>
    %c0_23 = arith.constant 0 : index
    %c0_24 = arith.constant 0 : index
    %31 = vector.load %arg10[%c0_23, %c0_24] : memref<8x128xbf16, #tpu.memory_space<vmem>>, vector<8x128xbf16>
    tpu.vector_store %arg10[%c0_23, %c0_24], %30 {strides = array<i32>} : memref<8x128xbf16, #tpu.memory_space<vmem>>, vector<8x128xbf16>,
    return
  }
  func.func @transform_0(%arg0: i32) -> (i32, i32) {
    %c0_i32 = arith.constant 0 : i32
    %c0_i32_0 = arith.constant 0 : i32
    return %arg0, %c0_i32 : i32, i32
  }
  func.func @transform_1(%arg0: i32) -> (i32, i32) {
    %c0_i32 = arith.constant 0 : i32
    %c0_i32_0 = arith.constant 0 : i32
    %c0_i32_1 = arith.constant 0 : i32
    return %c0_i32, %c0_i32_0 : i32, i32
  }
  func.func @transform_2(%arg0: i32) -> (i32, i32) {
    %c0_i32 = arith.constant 0 : i32
    %c0_i32_0 = arith.constant 0 : i32
    %c0_i32_1 = arith.constant 0 : i32
    return %c0_i32, %c0_i32_0 : i32, i32
  }
  func.func @transform_3(%arg0: i32) -> (i32, i32) {
    %c0_i32 = arith.constant 0 : i32
    %c0_i32_0 = arith.constant 0 : i32
    %c0_i32_1 = arith.constant 0 : i32
    return %c0_i32, %c0_i32_0 : i32, i32
  }
  func.func @transform_4(%arg0: i32) -> (i32, i32) {
    %c0_i32 = arith.constant 0 : i32
    %c0_i32_0 = arith.constant 0 : i32
    %c0_i32_1 = arith.constant 0 : i32
    return %c0_i32, %c0_i32_0 : i32, i32
  }
  func.func @transform_5(%arg0: i32) -> (i32, i32) {
    %c0_i32 = arith.constant 0 : i32
    %c0_i32_0 = arith.constant 0 : i32
    %c0_i32_1 = arith.constant 0 : i32
    return %c0_i32, %c0_i32_0 : i32, i32
  }
  func.func @transform_6(%arg0: i32) -> (i32, i32) {
    %c0_i32 = arith.constant 0 : i32
    %c0_i32_0 = arith.constant 0 : i32
    %c0_i32_1 = arith.constant 0 : i32
    return %c0_i32, %c0_i32_0 : i32, i32
  }
  func.func @transform_7(%arg0: i32) -> (i32, i32) {
    %c0_i32 = arith.constant 0 : i32
    %c0_i32_0 = arith.constant 0 : i32
    %c0_i32_1 = arith.constant 0 : i32
    return %c0_i32, %c0_i32_0 : i32, i32
  }
  func.func @transform_8(%arg0: i32) -> (i32, i32) {
    %c0_i32 = arith.constant 0 : i32
    %c0_i32_0 = arith.constant 0 : i32
    %c0_i32_1 = arith.constant 0 : i32
    return %c0_i32, %c0_i32_0 : i32, i32
  }
  func.func @transform_9(%arg0: i32) -> (i32, i32) {
    %c0_i32 = arith.constant 0 : i32
    %c0_i32_0 = arith.constant 0 : i32
    return %arg0, %c0_i32 : i32, i32
  }
}

</mosaic_0001>

<llo_original>
// kernel: tpu_custom_call.1
$region0: #{tpu_custom_call.1}
  #allocation0 [shape = 'u32[]', space=smem, size = 0x4, offset = 0x4, fixed_abs, tag = 'smem constant byte address 0x4 - core index']
  #allocation1 [shape = 'u32[144,128]{1,0:T(1,128)}', space=vmem, size = 0x12000, scoped, tag = 'internal scratch']
  %s0 = inlined_call_operand.hbm [shape: bf16[8,9], index: 0, kind: input, shape index: {}]
  %s1 = inlined_call_operand.hbm [shape: bf16[9,512], index: 1, kind: input, shape index: {}]
  %s2 = inlined_call_operand.vmem [shape: f32[1,512], index: 2, kind: input, shape index: {}]
  %s3 = inlined_call_operand.hbm [shape: bf16[512,512], index: 3, kind: input, shape index: {}]
  %s4 = inlined_call_operand.vmem [shape: f32[1,512], index: 4, kind: input, shape index: {}]
  %s5 = inlined_call_operand.hbm [shape: bf16[512,512], index: 5, kind: input, shape index: {}]
  %s6 = inlined_call_operand.vmem [shape: f32[1,512], index: 6, kind: input, shape index: {}]
  %s7 = inlined_call_operand.hbm [shape: bf16[512,128], index: 7, kind: input, shape index: {}]
  %s8 = inlined_call_operand.vmem [shape: f32[1,128], index: 8, kind: input, shape index: {}]
  %s9 = inlined_call_operand.hbm [shape: bf16[8,128], index: 9, kind: output, shape index: {}]
  %s10 = sld [smem:[#allocation0]]
  $region66: #{tpu_custom_call.1} parent=0
    _
  %s12 = ssub.s32 1, %s10
  %s13 = scalar_select 0, %s12, %s10
  $region1: #{tpu_custom_call.1} parent=0
    #allocation2 [shape = 'u8[2048]{0}', space=vmem, size = 0x800, scoped, tag = 'input window, operand 0, single buffered']
    #allocation3 [shape = 's32[1]{0}', space=sflag, size = 0x4, scoped, tag = 'scoped memory for tpu_custom_call.1']
    #allocation4 [shape = 's32[1]{0}', space=sflag, size = 0x4, scoped, tag = 'scoped memory for tpu_custom_call.1']
    #allocation5 [shape = 'u8[16384]{0}', space=vmem, size = 0x4000, scoped, tag = 'input window, operand 1, single buffered']
    #allocation6 [shape = 's32[1]{0}', space=sflag, size = 0x4, scoped, tag = 'scoped memory for tpu_custom_call.1']
    #allocation7 [shape = 'u8[524288]{0}', space=vmem, size = 0x80000, scoped, tag = 'input window, operand 3, single buffered']
    #allocation8 [shape = 'u8[524288]{0}', space=vmem, size = 0x80000, scoped, tag = 'input window, operand 5, single buffered']
    #allocation9 [shape = 's32[1]{0}', space=sflag, size = 0x4, scoped, tag = 'scoped memory for tpu_custom_call.1']
    #allocation10 [shape = 'u8[131072]{0}', space=vmem, size = 0x20000, scoped, tag = 'input window, operand 7, single buffered']
    #allocation11 [shape = 'u8[2048]{0}', space=vmem, size = 0x800, scoped, tag = 'output window, operand 0, single buffered']
    %14 = vsyncpa [#allocation3], 0
    %15 = vsyncpa [#allocation6], 0
    %16 = vsyncpa [#allocation9], 0
    %17 = vsyncpa [#allocation4], 0
    // Predicated region
    $region2: #{tpu_custom_call.1} parent=1 // pred_check
      _
    $region3: #{tpu_custom_call.1} parent=1 // pred_check_branch
      %19 = sbr.rel (0) target = $region5
    $region4: #{tpu_custom_call.1} parent=1 // pred_region
      %s21 = ssub.s32 64, 64
      %22 = vsyncadd [#allocation3], %s21
      %s24 = sshll.u32 [#allocation2], 4
      %s25 = int_to_ptr.vmem [resolvable:$true] %s24
      %27 = dma.hbm_to_vmem [thread:$0]  %s0, 64, %s25, [#allocation3]
    $region5: #{tpu_custom_call.1} parent=1 // pred_fallthru
      _
    // Predicated region
    $region6: #{tpu_custom_call.1} parent=1 // pred_check
      _
    $region7: #{tpu_custom_call.1} parent=1 // pred_check_branch
      %29 = sbr.rel (0) target = $region9
    $region8: #{tpu_custom_call.1} parent=1 // pred_region
      %s31 = ssub.s32 512, 512
      %32 = vsyncadd [#allocation6], %s31
      %s33 = sshll.u32 [#allocation5], 4
      %s34 = int_to_ptr.vmem [resolvable:$true] %s33
      %39 = dma.hbm_to_vmem [thread:$0]  %s1, 512, %s34, [#allocation6], 256, 256, 16
    $region9: #{tpu_custom_call.1} parent=1 // pred_fallthru
      _
    // Predicated region
    $region10: #{tpu_custom_call.1} parent=1 // pred_check
      _
    $region11: #{tpu_custom_call.1} parent=1 // pred_check_branch
      %41 = sbr.rel (0) target = $region13
    $region12: #{tpu_custom_call.1} parent=1 // pred_region
      _
    $region13: #{tpu_custom_call.1} parent=1 // pred_fallthru
      _
    // Predicated region
    $region14: #{tpu_custom_call.1} parent=1 // pred_check
      _
    $region15: #{tpu_custom_call.1} parent=1 // pred_check_branch
      %43 = sbr.rel (0) target = $region17
    $region16: #{tpu_custom_call.1} parent=1 // pred_region
      %s45 = ssub.s32 16384, 16384
      %46 = vsyncadd [#allocation6], %s45
      %s47 = sshll.u32 [#allocation7], 4
      %s48 = int_to_ptr.vmem [resolvable:$true] %s47
      %53 = dma.hbm_to_vmem [thread:$0]  %s3, 16384, %s48, [#allocation6], 256, 256, 16
    $region17: #{tpu_custom_call.1} parent=1 // pred_fallthru
      _
    // Predicated region
    $region18: #{tpu_custom_call.1} parent=1 // pred_check
      _
    $region19: #{tpu_custom_call.1} parent=1 // pred_check_branch
      %55 = sbr.rel (0) target = $region21
    $region20: #{tpu_custom_call.1} parent=1 // pred_region
      _
    $region21: #{tpu_custom_call.1} parent=1 // pred_fallthru
      _
    // Predicated region
    $region22: #{tpu_custom_call.1} parent=1 // pred_check
      _
    $region23: #{tpu_custom_call.1} parent=1 // pred_check_branch
      %57 = sbr.rel (0) target = $region25
    $region24: #{tpu_custom_call.1} parent=1 // pred_region
      %s59 = ssub.s32 16384, 16384
      %60 = vsyncadd [#allocation9], %s59
      %s61 = sshll.u32 [#allocation8], 4
      %s62 = int_to_ptr.vmem [resolvable:$true] %s61
      %67 = dma.hbm_to_vmem [thread:$0]  %s5, 16384, %s62, [#allocation9], 256, 256, 16
    $region25: #{tpu_custom_call.1} parent=1 // pred_fallthru
      _
    // Predicated region
    $region26: #{tpu_custom_call.1} parent=1 // pred_check
      _
    $region27: #{tpu_custom_call.1} parent=1 // pred_check_branch
      %69 = sbr.rel (0) target = $region29
    $region28: #{tpu_custom_call.1} parent=1 // pred_region
      _
    $region29: #{tpu_custom_call.1} parent=1 // pred_fallthru
      _
    // Predicated region
    $region30: #{tpu_custom_call.1} parent=1 // pred_check
      _
    $region31: #{tpu_custom_call.1} parent=1 // pred_check_branch
      %71 = sbr.rel (0) target = $region33
    $region32: #{tpu_custom_call.1} parent=1 // pred_region
      %s73 = ssub.s32 4096, 4096
      %74 = vsyncadd [#allocation9], %s73
      %s75 = sshll.u32 [#allocation10], 4
      %s76 = int_to_ptr.vmem [resolvable:$true] %s75
      %81 = dma.hbm_to_vmem [thread:$0]  %s7, 4096, %s76, [#allocation9], 64, 64, 4
    $region33: #{tpu_custom_call.1} parent=1 // pred_fallthru
      _
    // Predicated region
    $region34: #{tpu_custom_call.1} parent=1 // pred_check
      _
    $region35: #{tpu_custom_call.1} parent=1 // pred_check_branch
      %83 = sbr.rel (0) target = $region37
    $region36: #{tpu_custom_call.1} parent=1 // pred_region
      _
    $region37: #{tpu_custom_call.1} parent=1 // pred_fallthru
      _
    // Predicated region
    $region38: #{tpu_custom_call.1} parent=1 // pred_check
      _
    $region39: #{tpu_custom_call.1} parent=1 // pred_check_branch
      %85 = sbr.rel (0) target = $region41
    $region40: #{tpu_custom_call.1} parent=1 // pred_region
      %86 = dma.done [#allocation3], 64
    $region41: #{tpu_custom_call.1} parent=1 // pred_fallthru
      _
    // Predicated region
    $region42: #{tpu_custom_call.1} parent=1 // pred_check
      _
    $region43: #{tpu_custom_call.1} parent=1 // pred_check_branch
      %88 = sbr.rel (0) target = $region45
    $region44: #{tpu_custom_call.1} parent=1 // pred_region
      %89 = dma.done [#allocation6], 512
    $region45: #{tpu_custom_call.1} parent=1 // pred_fallthru
      _
    // Predicated region
    $region46: #{tpu_custom_call.1} parent=1 // pred_check
      _
    $region47: #{tpu_custom_call.1} parent=1 // pred_check_branch
      %91 = sbr.rel (0) target = $region49
    $region48: #{tpu_custom_call.1} parent=1 // pred_region
      %92 = dma.done [#allocation6], 16384
    $region49: #{tpu_custom_call.1} parent=1 // pred_fallthru
      _
    // Predicated region
    $region50: #{tpu_custom_call.1} parent=1 // pred_check
      _
    $region51: #{tpu_custom_call.1} parent=1 // pred_check_branch
      %94 = sbr.rel (0) target = $region53
    $region52: #{tpu_custom_call.1} parent=1 // pred_region
      %95 = dma.done [#allocation9], 16384
    $region53: #{tpu_custom_call.1} parent=1 // pred_fallthru
      _
    // Predicated region
    $region54: #{tpu_custom_call.1} parent=1 // pred_check
      _
    $region55: #{tpu_custom_call.1} parent=1 // pred_check_branch
      %97 = sbr.rel (0) target = $region57
    $region56: #{tpu_custom_call.1} parent=1 // pred_region
      %98 = dma.done [#allocation9], 4096
    $region57: #{tpu_custom_call.1} parent=1 // pred_fallthru
      _
    %v100 = vld [vmem:[#allocation2] sm:$0xf]
    %v101 = vld [vmem:[#allocation5] sm:$0xff]
    %v102 = vld [vmem:[#allocation5 + $0x8] sm:$0xff]
    %v103 = vld [vmem:[#allocation5 + $0x10] sm:$0x11]
    %v104 = vld [vmem:[#allocation5 + $0x18] sm:$0x11]
    %v105 = vld [vmem:[%s2] sm:$0xf]
    %v107 = vlaneseq
    %v108 = vshrl.u32 %v107, 7
    %v109 = vsub.s32 0, %v108
    %v110 = vrot.slane %v105, %v109
    %v111 = vlaneseq
    %v112 = vshrl.u32 %v111, 7
    %v113 = vsub.s32 1, %v112
    %v114 = vrot.slane %v105, %v113
    %v115 = vlaneseq
    %v116 = vshrl.u32 %v115, 7
    %v117 = vsub.s32 2, %v116
    %v118 = vrot.slane %v105, %v117
    %v119 = vlaneseq
    %v120 = vshrl.u32 %v119, 7
    %v121 = vsub.s32 3, %v120
    %v122 = vrot.slane %v105, %v121
    %v131 = vunpack.c.l.b16 %v101
    %v132 = vunpack.c.h.b16 %v101
    %v133 = vunpack.c.l.b16 %v102
    %v134 = vunpack.c.h.b16 %v102
    %v135 = vunpack.c.l.b16 %v103
    %v136 = vunpack.c.h.b16 %v103
    %v137 = vunpack.c.l.b16 %v104
    %v138 = vunpack.c.h.b16 %v104
    %v139 = vpack.c.b16 %v135, %v131
    %v140 = vpack.c.b16 %v136, %v132
    %v141 = vpack.c.b16 %v137, %v133
    %v142 = vpack.c.b16 %v138, %v134
    %vm143 = vcmask 72704
    %v145 = vsel %vm143, %v100, 0
    %vm147 = vcmask 1043456
    %vm148 = vcmask 1044480
    %v149 = vsel %vm147, 4294967295, 65535
    %v150 = vsel %vm148, %v149, 0
    %v152 = vand.u32 %v139, %v150
    %v155 = vand.u32 %v140, %v150
    %v158 = vand.u32 %v141, %v150
    %v161 = vand.u32 %v142, %v150
    %163 = vmatprep.subr.bf16.mxu0 %v155
    %164 = vmatpush1.bf16.msra.mxu0 %v152
    %165 = vmatprep.subr.bf16.mxu0 0
    %166 = vmatpush1.bf16.msra.mxu0 0
    %167 = vmatprep.subr.bf16.mxu0 0
    %168 = vmatpush1.bf16.msra.mxu0 0
    %169 = vmatprep.subr.bf16.mxu0 0
    %170 = vmatpush1.bf16.msra.mxu0 0
    %171 = vmatprep.subr.bf16.mxu0 0
    %172 = vmatpush1.bf16.msra.mxu0 0
    %173 = vmatprep.subr.bf16.mxu0 0
    %174 = vmatpush1.bf16.msra.mxu0 0
    %175 = vmatprep.subr.bf16.mxu0 0
    %176 = vmatpush1.bf16.msra.mxu0 0
    %177 = vmatprep.subr.bf16.mxu0 0
    %178 = vmatpush1.bf16.msra.mxu0 0
    %179 = vmatprep.subr.bf16.mxu0 0
    %180 = vmatpush1.bf16.msra.mxu0 0
    %181 = vmatprep.subr.bf16.mxu0 0
    %182 = vmatpush1.bf16.msra.mxu0 0
    %183 = vmatprep.subr.bf16.mxu0 0
    %184 = vmatpush1.bf16.msra.mxu0 0
    %185 = vmatprep.subr.bf16.mxu0 0
    %186 = vmatpush1.bf16.msra.mxu0 0
    %187 = vmatprep.subr.bf16.mxu0 0
    %188 = vmatpush1.bf16.msra.mxu0 0
    %189 = vmatprep.subr.bf16.mxu0 0
    %190 = vmatpush1.bf16.msra.mxu0 0
    %191 = vmatprep.subr.bf16.mxu0 0
    %192 = vmatpush1.bf16.msra.mxu0 0
    %193 = vmatprep.subr.bf16.mxu0 0
    %194 = vmatpush1.bf16.msra.mxu0 0
    %195 = vmatprep.mubr.bf16.mxu0 0
    %196 = vmatmul.mubr.bf16.gmra.mrb[0].mxu0 %v145
    %v197 = vpop.f32.mrb[0].mxu0
    %v198 = vadd.f32 %v110, %v197
    %v199 = vpop.f32.mrb[0].mxu0
    %v200 = vadd.f32 %v114, %v199
    %v201 = vpop.f32.mrb[0].mxu0
    %v202 = vpop.f32.mrb[0].mxu0
    %203 = vdwg.mxu0
    %204 = vmatprep.subr.bf16.mxu0 %v161
    %205 = vmatpush1.bf16.msra.mxu0 %v158
    %206 = vmatprep.subr.bf16.mxu0 0
    %207 = vmatpush1.bf16.msra.mxu0 0
    %208 = vmatprep.subr.bf16.mxu0 0
    %209 = vmatpush1.bf16.msra.mxu0 0
    %210 = vmatprep.subr.bf16.mxu0 0
    %211 = vmatpush1.bf16.msra.mxu0 0
    %212 = vmatprep.subr.bf16.mxu0 0
    %213 = vmatpush1.bf16.msra.mxu0 0
    %214 = vmatprep.subr.bf16.mxu0 0
    %215 = vmatpush1.bf16.msra.mxu0 0
    %216 = vmatprep.subr.bf16.mxu0 0
    %217 = vmatpush1.bf16.msra.mxu0 0
    %218 = vmatprep.subr.bf16.mxu0 0
    %219 = vmatpush1.bf16.msra.mxu0 0
    %220 = vmatprep.subr.bf16.mxu0 0
    %221 = vmatpush1.bf16.msra.mxu0 0
    %222 = vmatprep.subr.bf16.mxu0 0
    %223 = vmatpush1.bf16.msra.mxu0 0
    %224 = vmatprep.subr.bf16.mxu0 0
    %225 = vmatpush1.bf16.msra.mxu0 0
    %226 = vmatprep.subr.bf16.mxu0 0
    %227 = vmatpush1.bf16.msra.mxu0 0
    %228 = vmatprep.subr.bf16.mxu0 0
    %229 = vmatpush1.bf16.msra.mxu0 0
    %230 = vmatprep.subr.bf16.mxu0 0
    %231 = vmatpush1.bf16.msra.mxu0 0
    %232 = vmatprep.subr.bf16.mxu0 0
    %233 = vmatpush1.bf16.msra.mxu0 0
    %234 = vmatprep.subr.bf16.mxu0 0
    %235 = vmatpush1.bf16.msra.mxu0 0
    %236 = vmatprep.mubr.bf16.mxu0 0
    %237 = vmatmul.mubr.bf16.gmra.mrb[0].mxu0 %v145
    %v238 = vpop.f32.mrb[0].mxu0
    %v239 = vadd.f32 %v118, %v238
    %v240 = vpop.f32.mrb[0].mxu0
    %v241 = vadd.f32 %v122, %v240
    %v242 = vpop.f32.mrb[0].mxu0
    %v243 = vpop.f32.mrb[0].mxu0
    %244 = vdwg.mxu0
    %v245 = vmax.f32 %v198, 0.0
    %v246 = vmax.f32 %v200, 0.0
    %v247 = vmax.f32 %v239, 0.0
    %v248 = vmax.f32 %v241, 0.0
    %v249 = vpack.c.bf16 %v245, %v245
    %v250 = vpack.c.bf16 %v246, %v246
    %v251 = vpack.c.bf16 %v247, %v247
    %v252 = vpack.c.bf16 %v248, %v248
    %v253 = vld [vmem:[#allocation7] sm:$0xff]
    %v254 = vld [vmem:[#allocation7 + $0x8] sm:$0xff]
    %v255 = vld [vmem:[#allocation7 + $0x10] sm:$0xff]
    %v256 = vld [vmem:[#allocation7 + $0x18] sm:$0xff]
    %v257 = vld [vmem:[#allocation7 + $0x20] sm:$0xff]
    %v258 = vld [vmem:[#allocation7 + $0x28] sm:$0xff]
    %v259 = vld [vmem:[#allocation7 + $0x30] sm:$0xff]
    %v260 = vld [vmem:[#allocation7 + $0x38] sm:$0xff]
    %v261 = vld [vmem:[#allocation7 + $0x40] sm:$0xff]
    %v262 = vld [vmem:[#allocation7 + $0x48] sm:$0xff]
    %v263 = vld [vmem:[#allocation7 + $0x50] sm:$0xff]
    %v264 = vld [vmem:[#allocation7 + $0x58] sm:$0xff]
    %v265 = vld [vmem:[#allocation7 + $0x60] sm:$0xff]
    %v266 = vld [vmem:[#allocation7 + $0x68] sm:$0xff]
    %v267 = vld [vmem:[#allocation7 + $0x70] sm:$0xff]
    %v268 = vld [vmem:[#allocation7 + $0x78] sm:$0xff]
    %v269 = vld [vmem:[#allocation7 + $0x80] sm:$0xff]
    %v270 = vld [vmem:[#allocation7 + $0x88] sm:$0xff]
    %v271 = vld [vmem:[#allocation7 + $0x90] sm:$0xff]
    %v272 = vld [vmem:[#allocation7 + $0x98] sm:$0xff]
    %v273 = vld [vmem:[#allocation7 + $0xa0] sm:$0xff]
    %v274 = vld [vmem:[#allocation7 + $0xa8] sm:$0xff]
    %v275 = vld [vmem:[#allocation7 + $0xb0] sm:$0xff]
    %v276 = vld [vmem:[#allocation7 + $0xb8] sm:$0xff]
    %v277 = vld [vmem:[#allocation7 + $0xc0] sm:$0xff]
    %v278 = vld [vmem:[#allocation7 + $0xc8] sm:$0xff]
    %v279 = vld [vmem:[#allocation7 + $0xd0] sm:$0xff]
    %v280 = vld [vmem:[#allocation7 + $0xd8] sm:$0xff]
    %v281 = vld [vmem:[#allocation7 + $0xe0] sm:$0xff]
    %v282 = vld [vmem:[#allocation7 + $0xe8] sm:$0xff]
    %v283 = vld [vmem:[#allocation7 + $0xf0] sm:$0xff]
    %v284 = vld [vmem:[#allocation7 + $0xf8] sm:$0xff]
    %v285 = vld [vmem:[#allocation7 + $0x100] sm:$0xff]
    %v286 = vld [vmem:[#allocation7 + $0x108] sm:$0xff]
    %v287 = vld [vmem:[#allocation7 + $0x110] sm:$0xff]
    %v288 = vld [vmem:[#allocation7 + $0x118] sm:$0xff]
    %v289 = vld [vmem:[#allocation7 + $0x120] sm:$0xff]
    %v290 = vld [vmem:[#allocation7 + $0x128] sm:$0xff]
    %v291 = vld [vmem:[#allocation7 + $0x130] sm:$0xff]
    %v292 = vld [vmem:[#allocation7 + $0x138] sm:$0xff]
    %v293 = vld [vmem:[#allocation7 + $0x140] sm:$0xff]
    %v294 = vld [vmem:[#allocation7 + $0x148] sm:$0xff]
    %v295 = vld [vmem:[#allocation7 + $0x150] sm:$0xff]
    %v296 = vld [vmem:[#allocation7 + $0x158] sm:$0xff]
    %v297 = vld [vmem:[#allocation7 + $0x160] sm:$0xff]
    %v298 = vld [vmem:[#allocation7 + $0x168] sm:$0xff]
    %v299 = vld [vmem:[#allocation7 + $0x170] sm:$0xff]
    %v300 = vld [vmem:[#allocation7 + $0x178] sm:$0xff]
    %v301 = vld [vmem:[#allocation7 + $0x180] sm:$0xff]
    %v302 = vld [vmem:[#allocation7 + $0x188] sm:$0xff]
    %v303 = vld [vmem:[#allocation7 + $0x190] sm:$0xff]
    %v304 = vld [vmem:[#allocation7 + $0x198] sm:$0xff]
    %v305 = vld [vmem:[#allocation7 + $0x1a0] sm:$0xff]
    %v306 = vld [vmem:[#allocation7 + $0x1a8] sm:$0xff]
    %v307 = vld [vmem:[#allocation7 + $0x1b0] sm:$0xff]
    %v308 = vld [vmem:[#allocation7 + $0x1b8] sm:$0xff]
    %v309 = vld [vmem:[#allocation7 + $0x1c0] sm:$0xff]
    %v310 = vld [vmem:[#allocation7 + $0x1c8] sm:$0xff]
    %v311 = vld [vmem:[#allocation7 + $0x1d0] sm:$0xff]
    %v312 = vld [vmem:[#allocation7 + $0x1d8] sm:$0xff]
    %v313 = vld [vmem:[#allocation7 + $0x1e0] sm:$0xff]
    %v314 = vld [vmem:[#allocation7 + $0x1e8] sm:$0xff]
    %v315 = vld [vmem:[#allocation7 + $0x1f0] sm:$0xff]
    %v316 = vld [vmem:[#allocation7 + $0x1f8] sm:$0xff]
    %v317 = vld [vmem:[#allocation7 + $0x200] sm:$0xff]
    %v318 = vld [vmem:[#allocation7 + $0x208] sm:$0xff]
    %v319 = vld [vmem:[#allocation7 + $0x210] sm:$0xff]
    %v320 = vld [vmem:[#allocation7 + $0x218] sm:$0xff]
    %v321 = vld [vmem:[#allocation7 + $0x220] sm:$0xff]
    %v322 = vld [vmem:[#allocation7 + $0x228] sm:$0xff]
    %v323 = vld [vmem:[#allocation7 + $0x230] sm:$0xff]
    %v324 = vld [vmem:[#allocation7 + $0x238] sm:$0xff]
    %v325 = vld [vmem:[#allocation7 + $0x240] sm:$0xff]
    %v326 = vld [vmem:[#allocation7 + $0x248] sm:$0xff]
    %v327 = vld [vmem:[#allocation7 + $0x250] sm:$0xff]
    %v328 = vld [vmem:[#allocation7 + $0x258] sm:$0xff]
    %v329 = vld [vmem:[#allocation7 + $0x260] sm:$0xff]
    %v330 = vld [vmem:[#allocation7 + $0x268] sm:$0xff]
    %v331 = vld [vmem:[#allocation7 + $0x270] sm:$0xff]
    %v332 = vld [vmem:[#allocation7 + $0x278] sm:$0xff]
    %v333 = vld [vmem:[#allocation7 + $0x280] sm:$0xff]
    %v334 = vld [vmem:[#allocation7 + $0x288] sm:$0xff]
    %v335 = vld [vmem:[#allocation7 + $0x290] sm:$0xff]
    %v336 = vld [vmem:[#allocation7 + $0x298] sm:$0xff]
    %v337 = vld [vmem:[#allocation7 + $0x2a0] sm:$0xff]
    %v338 = vld [vmem:[#allocation7 + $0x2a8] sm:$0xff]
    %v339 = vld [vmem:[#allocation7 + $0x2b0] sm:$0xff]
    %v340 = vld [vmem:[#allocation7 + $0x2b8] sm:$0xff]
    %v341 = vld [vmem:[#allocation7 + $0x2c0] sm:$0xff]
    %v342 = vld [vmem:[#allocation7 + $0x2c8] sm:$0xff]
    %v343 = vld [vmem:[#allocation7 + $0x2d0] sm:$0xff]
    %v344 = vld [vmem:[#allocation7 + $0x2d8] sm:$0xff]
    %v345 = vld [vmem:[#allocation7 + $0x2e0] sm:$0xff]
    %v346 = vld [vmem:[#allocation7 + $0x2e8] sm:$0xff]
    %v347 = vld [vmem:[#allocation7 + $0x2f0] sm:$0xff]
    %v348 = vld [vmem:[#allocation7 + $0x2f8] sm:$0xff]
    %v349 = vld [vmem:[#allocation7 + $0x300] sm:$0xff]
    %v350 = vld [vmem:[#allocation7 + $0x308] sm:$0xff]
    %v351 = vld [vmem:[#allocation7 + $0x310] sm:$0xff]
    %v352 = vld [vmem:[#allocation7 + $0x318] sm:$0xff]
    %v353 = vld [vmem:[#allocation7 + $0x320] sm:$0xff]
    %v354 = vld [vmem:[#allocation7 + $0x328] sm:$0xff]
    %v355 = vld [vmem:[#allocation7 + $0x330] sm:$0xff]
    %v356 = vld [vmem:[#allocation7 + $0x338] sm:$0xff]
    %v357 = vld [vmem:[#allocation7 + $0x340] sm:$0xff]
    %v358 = vld [vmem:[#allocation7 + $0x348] sm:$0xff]
    %v359 = vld [vmem:[#allocation7 + $0x350] sm:$0xff]
    %v360 = vld [vmem:[#allocation7 + $0x358] sm:$0xff]
    %v361 = vld [vmem:[#allocation7 + $0x360] sm:$0xff]
    %v362 = vld [vmem:[#allocation7 + $0x368] sm:$0xff]
    %v363 = vld [vmem:[#allocation7 + $0x370] sm:$0xff]
    %v364 = vld [vmem:[#allocation7 + $0x378] sm:$0xff]
    %v365 = vld [vmem:[#allocation7 + $0x380] sm:$0xff]
    %v366 = vld [vmem:[#allocation7 + $0x388] sm:$0xff]
    %v367 = vld [vmem:[#allocation7 + $0x390] sm:$0xff]
    %v368 = vld [vmem:[#allocation7 + $0x398] sm:$0xff]
    %v369 = vld [vmem:[#allocation7 + $0x3a0] sm:$0xff]
    %v370 = vld [vmem:[#allocation7 + $0x3a8] sm:$0xff]
    %v371 = vld [vmem:[#allocation7 + $0x3b0] sm:$0xff]
    %v372 = vld [vmem:[#allocation7 + $0x3b8] sm:$0xff]
    %v373 = vld [vmem:[#allocation7 + $0x3c0] sm:$0xff]
    %v374 = vld [vmem:[#allocation7 + $0x3c8] sm:$0xff]
    %v375 = vld [vmem:[#allocation7 + $0x3d0] sm:$0xff]
    %v376 = vld [vmem:[#allocation7 + $0x3d8] sm:$0xff]
    %v377 = vld [vmem:[#allocation7 + $0x3e0] sm:$0xff]
    %v378 = vld [vmem:[#allocation7 + $0x3e8] sm:$0xff]
    %v379 = vld [vmem:[#allocation7 + $0x3f0] sm:$0xff]
    %v380 = vld [vmem:[#allocation7 + $0x3f8] sm:$0xff]
    %v381 = vld [vmem:[%s4] sm:$0xf]
    %v383 = vlaneseq
    %v384 = vshrl.u32 %v383, 7
    %v385 = vsub.s32 0, %v384
    %v386 = vrot.slane %v381, %v385
    %v387 = vlaneseq
    %v388 = vshrl.u32 %v387, 7
    %v389 = vsub.s32 1, %v388
    %v390 = vrot.slane %v381, %v389
    %v391 = vlaneseq
    %v392 = vshrl.u32 %v391, 7
    %v393 = vsub.s32 2, %v392
    %v394 = vrot.slane %v381, %v393
    %v395 = vlaneseq
    %v396 = vshrl.u32 %v395, 7
    %v397 = vsub.s32 3, %v396
    %v398 = vrot.slane %v381, %v397
    %v531 = vunpack.c.l.b16 %v253
    %v532 = vunpack.c.h.b16 %v253
    %v533 = vunpack.c.l.b16 %v254
    %v534 = vunpack.c.h.b16 %v254
    %v535 = vunpack.c.l.b16 %v255
    %v536 = vunpack.c.h.b16 %v255
    %v537 = vunpack.c.l.b16 %v256
    %v538 = vunpack.c.h.b16 %v256
    %v539 = vunpack.c.l.b16 %v257
    %v540 = vunpack.c.h.b16 %v257
    %v541 = vunpack.c.l.b16 %v258
    %v542 = vunpack.c.h.b16 %v258
    %v543 = vunpack.c.l.b16 %v259
    %v544 = vunpack.c.h.b16 %v259
    %v545 = vunpack.c.l.b16 %v260
    %v546 = vunpack.c.h.b16 %v260
    %v547 = vunpack.c.l.b16 %v261
    %v548 = vunpack.c.h.b16 %v261
    %v549 = vunpack.c.l.b16 %v262
    %v550 = vunpack.c.h.b16 %v262
    %v551 = vunpack.c.l.b16 %v263
    %v552 = vunpack.c.h.b16 %v263
    %v553 = vunpack.c.l.b16 %v264
    %v554 = vunpack.c.h.b16 %v264
    %v555 = vunpack.c.l.b16 %v265
    %v556 = vunpack.c.h.b16 %v265
    %v557 = vunpack.c.l.b16 %v266
    %v558 = vunpack.c.h.b16 %v266
    %v559 = vunpack.c.l.b16 %v267
    %v560 = vunpack.c.h.b16 %v267
    %v561 = vunpack.c.l.b16 %v268
    %v562 = vunpack.c.h.b16 %v268
    %v563 = vunpack.c.l.b16 %v269
    %v564 = vunpack.c.h.b16 %v269
    %v565 = vunpack.c.l.b16 %v270
    %v566 = vunpack.c.h.b16 %v270
    %v567 = vunpack.c.l.b16 %v271
    %v568 = vunpack.c.h.b16 %v271
    %v569 = vunpack.c.l.b16 %v272
    %v570 = vunpack.c.h.b16 %v272
    %v571 = vunpack.c.l.b16 %v273
    %v572 = vunpack.c.h.b16 %v273
    %v573 = vunpack.c.l.b16 %v274
    %v574 = vunpack.c.h.b16 %v274
    %v575 = vunpack.c.l.b16 %v275
    %v576 = vunpack.c.h.b16 %v275
    %v577 = vunpack.c.l.b16 %v276
    %v578 = vunpack.c.h.b16 %v276
    %v579 = vunpack.c.l.b16 %v277
    %v580 = vunpack.c.h.b16 %v277
    %v581 = vunpack.c.l.b16 %v278
    %v582 = vunpack.c.h.b16 %v278
    %v583 = vunpack.c.l.b16 %v279
    %v584 = vunpack.c.h.b16 %v279
    %v585 = vunpack.c.l.b16 %v280
    %v586 = vunpack.c.h.b16 %v280
    %v587 = vunpack.c.l.b16 %v281
    %v588 = vunpack.c.h.b16 %v281
    %v589 = vunpack.c.l.b16 %v282
    %v590 = vunpack.c.h.b16 %v282
    %v591 = vunpack.c.l.b16 %v283
    %v592 = vunpack.c.h.b16 %v283
    %v593 = vunpack.c.l.b16 %v284
    %v594 = vunpack.c.h.b16 %v284
    %v595 = vunpack.c.l.b16 %v285
    %v596 = vunpack.c.h.b16 %v285
    %v597 = vunpack.c.l.b16 %v286
    %v598 = vunpack.c.h.b16 %v286
    %v599 = vunpack.c.l.b16 %v287
    %v600 = vunpack.c.h.b16 %v287
    %v601 = vunpack.c.l.b16 %v288
    %v602 = vunpack.c.h.b16 %v288
    %v603 = vunpack.c.l.b16 %v289
    %v604 = vunpack.c.h.b16 %v289
    %v605 = vunpack.c.l.b16 %v290
    %v606 = vunpack.c.h.b16 %v290
    %v607 = vunpack.c.l.b16 %v291
    %v608 = vunpack.c.h.b16 %v291
    %v609 = vunpack.c.l.b16 %v292
    %v610 = vunpack.c.h.b16 %v292
    %v611 = vunpack.c.l.b16 %v293
    %v612 = vunpack.c.h.b16 %v293
    %v613 = vunpack.c.l.b16 %v294
    %v614 = vunpack.c.h.b16 %v294
    %v615 = vunpack.c.l.b16 %v295
    %v616 = vunpack.c.h.b16 %v295
    %v617 = vunpack.c.l.b16 %v296
    %v618 = vunpack.c.h.b16 %v296
    %v619 = vunpack.c.l.b16 %v297
    %v620 = vunpack.c.h.b16 %v297
    %v621 = vunpack.c.l.b16 %v298
    %v622 = vunpack.c.h.b16 %v298
    %v623 = vunpack.c.l.b16 %v299
    %v624 = vunpack.c.h.b16 %v299
    %v625 = vunpack.c.l.b16 %v300
    %v626 = vunpack.c.h.b16 %v300
    %v627 = vunpack.c.l.b16 %v301
    %v628 = vunpack.c.h.b16 %v301
    %v629 = vunpack.c.l.b16 %v302
    %v630 = vunpack.c.h.b16 %v302
    %v631 = vunpack.c.l.b16 %v303
    %v632 = vunpack.c.h.b16 %v303
    %v633 = vunpack.c.l.b16 %v304
    %v634 = vunpack.c.h.b16 %v304
    %v635 = vunpack.c.l.b16 %v305
    %v636 = vunpack.c.h.b16 %v305
    %v637 = vunpack.c.l.b16 %v306
    %v638 = vunpack.c.h.b16 %v306
    %v639 = vunpack.c.l.b16 %v307
    %v640 = vunpack.c.h.b16 %v307
    %v641 = vunpack.c.l.b16 %v308
    %v642 = vunpack.c.h.b16 %v308
    %v643 = vunpack.c.l.b16 %v309
    %v644 = vunpack.c.h.b16 %v309
    %v645 = vunpack.c.l.b16 %v310
    %v646 = vunpack.c.h.b16 %v310
    %v647 = vunpack.c.l.b16 %v311
    %v648 = vunpack.c.h.b16 %v311
    %v649 = vunpack.c.l.b16 %v312
    %v650 = vunpack.c.h.b16 %v312
    %v651 = vunpack.c.l.b16 %v313
    %v652 = vunpack.c.h.b16 %v313
    %v653 = vunpack.c.l.b16 %v314
    %v654 = vunpack.c.h.b16 %v314
    %v655 = vunpack.c.l.b16 %v315
    %v656 = vunpack.c.h.b16 %v315
    %v657 = vunpack.c.l.b16 %v316
    %v658 = vunpack.c.h.b16 %v316
    %v659 = vunpack.c.l.b16 %v317
    %v660 = vunpack.c.h.b16 %v317
    %v661 = vunpack.c.l.b16 %v318
    %v662 = vunpack.c.h.b16 %v318
    %v663 = vunpack.c.l.b16 %v319
    %v664 = vunpack.c.h.b16 %v319
    %v665 = vunpack.c.l.b16 %v320
    %v666 = vunpack.c.h.b16 %v320
    %v667 = vunpack.c.l.b16 %v321
    %v668 = vunpack.c.h.b16 %v321
    %v669 = vunpack.c.l.b16 %v322
    %v670 = vunpack.c.h.b16 %v322
    %v671 = vunpack.c.l.b16 %v323
    %v672 = vunpack.c.h.b16 %v323
    %v673 = vunpack.c.l.b16 %v324
    %v674 = vunpack.c.h.b16 %v324
    %v675 = vunpack.c.l.b16 %v325
    %v676 = vunpack.c.h.b16 %v325
    %v677 = vunpack.c.l.b16 %v326
    %v678 = vunpack.c.h.b16 %v326
    %v679 = vunpack.c.l.b16 %v327
    %v680 = vunpack.c.h.b16 %v327
    %v681 = vunpack.c.l.b16 %v328
    %v682 = vunpack.c.h.b16 %v328
    %v683 = vunpack.c.l.b16 %v329
    %v684 = vunpack.c.h.b16 %v329
    %v685 = vunpack.c.l.b16 %v330
    %v686 = vunpack.c.h.b16 %v330
    %v687 = vunpack.c.l.b16 %v331
    %v688 = vunpack.c.h.b16 %v331
    %v689 = vunpack.c.l.b16 %v332
    %v690 = vunpack.c.h.b16 %v332
    %v691 = vunpack.c.l.b16 %v333
    %v692 = vunpack.c.h.b16 %v333
    %v693 = vunpack.c.l.b16 %v334
    %v694 = vunpack.c.h.b16 %v334
    %v695 = vunpack.c.l.b16 %v335
    %v696 = vunpack.c.h.b16 %v335
    %v697 = vunpack.c.l.b16 %v336
    %v698 = vunpack.c.h.b16 %v336
    %v699 = vunpack.c.l.b16 %v337
    %v700 = vunpack.c.h.b16 %v337
    %v701 = vunpack.c.l.b16 %v338
    %v702 = vunpack.c.h.b16 %v338
    %v703 = vunpack.c.l.b16 %v339
    %v704 = vunpack.c.h.b16 %v339
    %v705 = vunpack.c.l.b16 %v340
    %v706 = vunpack.c.h.b16 %v340
    %v707 = vunpack.c.l.b16 %v341
    %v708 = vunpack.c.h.b16 %v341
    %v709 = vunpack.c.l.b16 %v342
    %v710 = vunpack.c.h.b16 %v342
    %v711 = vunpack.c.l.b16 %v343
    %v712 = vunpack.c.h.b16 %v343
    %v713 = vunpack.c.l.b16 %v344
    %v714 = vunpack.c.h.b16 %v344
    %v715 = vunpack.c.l.b16 %v345
    %v716 = vunpack.c.h.b16 %v345
    %v717 = vunpack.c.l.b16 %v346
    %v718 = vunpack.c.h.b16 %v346
    %v719 = vunpack.c.l.b16 %v347
    %v720 = vunpack.c.h.b16 %v347
    %v721 = vunpack.c.l.b16 %v348
    %v722 = vunpack.c.h.b16 %v348
    %v723 = vunpack.c.l.b16 %v349
    %v724 = vunpack.c.h.b16 %v349
    %v725 = vunpack.c.l.b16 %v350
    %v726 = vunpack.c.h.b16 %v350
    %v727 = vunpack.c.l.b16 %v351
    %v728 = vunpack.c.h.b16 %v351
    %v729 = vunpack.c.l.b16 %v352
    %v730 = vunpack.c.h.b16 %v352
    %v731 = vunpack.c.l.b16 %v353
    %v732 = vunpack.c.h.b16 %v353
    %v733 = vunpack.c.l.b16 %v354
    %v734 = vunpack.c.h.b16 %v354
    %v735 = vunpack.c.l.b16 %v355
    %v736 = vunpack.c.h.b16 %v355
    %v737 = vunpack.c.l.b16 %v356
    %v738 = vunpack.c.h.b16 %v356
    %v739 = vunpack.c.l.b16 %v357
    %v740 = vunpack.c.h.b16 %v357
    %v741 = vunpack.c.l.b16 %v358
    %v742 = vunpack.c.h.b16 %v358
    %v743 = vunpack.c.l.b16 %v359
    %v744 = vunpack.c.h.b16 %v359
    %v745 = vunpack.c.l.b16 %v360
    %v746 = vunpack.c.h.b16 %v360
    %v747 = vunpack.c.l.b16 %v361
    %v748 = vunpack.c.h.b16 %v361
    %v749 = vunpack.c.l.b16 %v362
    %v750 = vunpack.c.h.b16 %v362
    %v751 = vunpack.c.l.b16 %v363
    %v752 = vunpack.c.h.b16 %v363
    %v753 = vunpack.c.l.b16 %v364
    %v754 = vunpack.c.h.b16 %v364
    %v755 = vunpack.c.l.b16 %v365
    %v756 = vunpack.c.h.b16 %v365
    %v757 = vunpack.c.l.b16 %v366
    %v758 = vunpack.c.h.b16 %v366
    %v759 = vunpack.c.l.b16 %v367
    %v760 = vunpack.c.h.b16 %v367
    %v761 = vunpack.c.l.b16 %v368
    %v762 = vunpack.c.h.b16 %v368
    %v763 = vunpack.c.l.b16 %v369
    %v764 = vunpack.c.h.b16 %v369
    %v765 = vunpack.c.l.b16 %v370
    %v766 = vunpack.c.h.b16 %v370
    %v767 = vunpack.c.l.b16 %v371
    %v768 = vunpack.c.h.b16 %v371
    %v769 = vunpack.c.l.b16 %v372
    %v770 = vunpack.c.h.b16 %v372
    %v771 = vunpack.c.l.b16 %v373
    %v772 = vunpack.c.h.b16 %v373
    %v773 = vunpack.c.l.b16 %v374
    %v774 = vunpack.c.h.b16 %v374
    %v775 = vunpack.c.l.b16 %v375
    %v776 = vunpack.c.h.b16 %v375
    %v777 = vunpack.c.l.b16 %v376
    %v778 = vunpack.c.h.b16 %v376
    %v779 = vunpack.c.l.b16 %v377
    %v780 = vunpack.c.h.b16 %v377
    %v781 = vunpack.c.l.b16 %v378
    %v782 = vunpack.c.h.b16 %v378
    %v783 = vunpack.c.l.b16 %v379
    %v784 = vunpack.c.h.b16 %v379
    %v785 = vunpack.c.l.b16 %v380
    %v786 = vunpack.c.h.b16 %v380
    %v787 = vpack.c.b16 %v535, %v531
    %v788 = vpack.c.b16 %v536, %v532
    %v789 = vpack.c.b16 %v537, %v533
    %v790 = vpack.c.b16 %v538, %v534
    %v791 = vpack.c.b16 %v543, %v539
    %v792 = vpack.c.b16 %v544, %v540
    %v793 = vpack.c.b16 %v545, %v541
    %v794 = vpack.c.b16 %v546, %v542
    %v795 = vpack.c.b16 %v551, %v547
    %v796 = vpack.c.b16 %v552, %v548
    %v797 = vpack.c.b16 %v553, %v549
    %v798 = vpack.c.b16 %v554, %v550
    %v799 = vpack.c.b16 %v559, %v555
    %v800 = vpack.c.b16 %v560, %v556
    %v801 = vpack.c.b16 %v561, %v557
    %v802 = vpack.c.b16 %v562, %v558
    %v803 = vpack.c.b16 %v567, %v563
    %v804 = vpack.c.b16 %v568, %v564
    %v805 = vpack.c.b16 %v569, %v565
    %v806 = vpack.c.b16 %v570, %v566
    %v807 = vpack.c.b16 %v575, %v571
    %v808 = vpack.c.b16 %v576, %v572
    %v809 = vpack.c.b16 %v577, %v573
    %v810 = vpack.c.b16 %v578, %v574
    %v811 = vpack.c.b16 %v583, %v579
    %v812 = vpack.c.b16 %v584, %v580
    %v813 = vpack.c.b16 %v585, %v581
    %v814 = vpack.c.b16 %v586, %v582
    %v815 = vpack.c.b16 %v591, %v587
    %v816 = vpack.c.b16 %v592, %v588
    %v817 = vpack.c.b16 %v593, %v589
    %v818 = vpack.c.b16 %v594, %v590
    %v819 = vpack.c.b16 %v599, %v595
    %v820 = vpack.c.b16 %v600, %v596
    %v821 = vpack.c.b16 %v601, %v597
    %v822 = vpack.c.b16 %v602, %v598
    %v823 = vpack.c.b16 %v607, %v603
    %v824 = vpack.c.b16 %v608, %v604
    %v825 = vpack.c.b16 %v609, %v605
    %v826 = vpack.c.b16 %v610, %v606
    %v827 = vpack.c.b16 %v615, %v611
    %v828 = vpack.c.b16 %v616, %v612
    %v829 = vpack.c.b16 %v617, %v613
    %v830 = vpack.c.b16 %v618, %v614
    %v831 = vpack.c.b16 %v623, %v619
    %v832 = vpack.c.b16 %v624, %v620
    %v833 = vpack.c.b16 %v625, %v621
    %v834 = vpack.c.b16 %v626, %v622
    %v835 = vpack.c.b16 %v631, %v627
    %v836 = vpack.c.b16 %v632, %v628
    %v837 = vpack.c.b16 %v633, %v629
    %v838 = vpack.c.b16 %v634, %v630
    %v839 = vpack.c.b16 %v639, %v635
    %v840 = vpack.c.b16 %v640, %v636
    %v841 = vpack.c.b16 %v641, %v637
    %v842 = vpack.c.b16 %v642, %v638
    %v843 = vpack.c.b16 %v647, %v643
    %v844 = vpack.c.b16 %v648, %v644
    %v845 = vpack.c.b16 %v649, %v645
    %v846 = vpack.c.b16 %v650, %v646
    %v847 = vpack.c.b16 %v655, %v651
    %v848 = vpack.c.b16 %v656, %v652
    %v849 = vpack.c.b16 %v657, %v653
    %v850 = vpack.c.b16 %v658, %v654
    %v851 = vpack.c.b16 %v663, %v659
    %v852 = vpack.c.b16 %v664, %v660
    %v853 = vpack.c.b16 %v665, %v661
    %v854 = vpack.c.b16 %v666, %v662
    %v855 = vpack.c.b16 %v671, %v667
    %v856 = vpack.c.b16 %v672, %v668
    %v857 = vpack.c.b16 %v673, %v669
    %v858 = vpack.c.b16 %v674, %v670
    %v859 = vpack.c.b16 %v679, %v675
    %v860 = vpack.c.b16 %v680, %v676
    %v861 = vpack.c.b16 %v681, %v677
    %v862 = vpack.c.b16 %v682, %v678
    %v863 = vpack.c.b16 %v687, %v683
    %v864 = vpack.c.b16 %v688, %v684
    %v865 = vpack.c.b16 %v689, %v685
    %v866 = vpack.c.b16 %v690, %v686
    %v867 = vpack.c.b16 %v695, %v691
    %v868 = vpack.c.b16 %v696, %v692
    %v869 = vpack.c.b16 %v697, %v693
    %v870 = vpack.c.b16 %v698, %v694
    %v871 = vpack.c.b16 %v703, %v699
    %v872 = vpack.c.b16 %v704, %v700
    %v873 = vpack.c.b16 %v705, %v701
    %v874 = vpack.c.b16 %v706, %v702
    %v875 = vpack.c.b16 %v711, %v707
    %v876 = vpack.c.b16 %v712, %v708
    %v877 = vpack.c.b16 %v713, %v709
    %v878 = vpack.c.b16 %v714, %v710
    %v879 = vpack.c.b16 %v719, %v715
    %v880 = vpack.c.b16 %v720, %v716
    %v881 = vpack.c.b16 %v721, %v717
    %v882 = vpack.c.b16 %v722, %v718
    %v883 = vpack.c.b16 %v727, %v723
    %v884 = vpack.c.b16 %v728, %v724
    %v885 = vpack.c.b16 %v729, %v725
    %v886 = vpack.c.b16 %v730, %v726
    %v887 = vpack.c.b16 %v735, %v731
    %v888 = vpack.c.b16 %v736, %v732
    %v889 = vpack.c.b16 %v737, %v733
    %v890 = vpack.c.b16 %v738, %v734
    %v891 = vpack.c.b16 %v743, %v739
    %v892 = vpack.c.b16 %v744, %v740
    %v893 = vpack.c.b16 %v745, %v741
    %v894 = vpack.c.b16 %v746, %v742
    %v895 = vpack.c.b16 %v751, %v747
    %v896 = vpack.c.b16 %v752, %v748
    %v897 = vpack.c.b16 %v753, %v749
    %v898 = vpack.c.b16 %v754, %v750
    %v899 = vpack.c.b16 %v759, %v755
    %v900 = vpack.c.b16 %v760, %v756
    %v901 = vpack.c.b16 %v761, %v757
    %v902 = vpack.c.b16 %v762, %v758
    %v903 = vpack.c.b16 %v767, %v763
    %v904 = vpack.c.b16 %v768, %v764
    %v905 = vpack.c.b16 %v769, %v765
    %v906 = vpack.c.b16 %v770, %v766
    %v907 = vpack.c.b16 %v775, %v771
    %v908 = vpack.c.b16 %v776, %v772
    %v909 = vpack.c.b16 %v777, %v773
    %v910 = vpack.c.b16 %v778, %v774
    %v911 = vpack.c.b16 %v783, %v779
    %v912 = vpack.c.b16 %v784, %v780
    %v913 = vpack.c.b16 %v785, %v781
    %v914 = vpack.c.b16 %v786, %v782
    %1043 = vmatprep.subr.bf16.mxu0 %v788
    %1044 = vmatpush1.bf16.msra.mxu0 %v787
    %1045 = vmatprep.subr.bf16.mxu0 %v792
    %1046 = vmatpush1.bf16.msra.mxu0 %v791
    %1047 = vmatprep.subr.bf16.mxu0 %v796
    %1048 = vmatpush1.bf16.msra.mxu0 %v795
    %1049 = vmatprep.subr.bf16.mxu0 %v800
    %1050 = vmatpush1.bf16.msra.mxu0 %v799
    %1051 = vmatprep.subr.bf16.mxu0 %v804
    %1052 = vmatpush1.bf16.msra.mxu0 %v803
    %1053 = vmatprep.subr.bf16.mxu0 %v808
    %1054 = vmatpush1.bf16.msra.mxu0 %v807
    %1055 = vmatprep.subr.bf16.mxu0 %v812
    %1056 = vmatpush1.bf16.msra.mxu0 %v811
    %1057 = vmatprep.subr.bf16.mxu0 %v816
    %1058 = vmatpush1.bf16.msra.mxu0 %v815
    %1059 = vmatprep.subr.bf16.mxu0 %v820
    %1060 = vmatpush1.bf16.msra.mxu0 %v819
    %1061 = vmatprep.subr.bf16.mxu0 %v824
    %1062 = vmatpush1.bf16.msra.mxu0 %v823
    %1063 = vmatprep.subr.bf16.mxu0 %v828
    %1064 = vmatpush1.bf16.msra.mxu0 %v827
    %1065 = vmatprep.subr.bf16.mxu0 %v832
    %1066 = vmatpush1.bf16.msra.mxu0 %v831
    %1067 = vmatprep.subr.bf16.mxu0 %v836
    %1068 = vmatpush1.bf16.msra.mxu0 %v835
    %1069 = vmatprep.subr.bf16.mxu0 %v840
    %1070 = vmatpush1.bf16.msra.mxu0 %v839
    %1071 = vmatprep.subr.bf16.mxu0 %v844
    %1072 = vmatpush1.bf16.msra.mxu0 %v843
    %1073 = vmatprep.subr.bf16.mxu0 %v848
    %1074 = vmatpush1.bf16.msra.mxu0 %v847
    %1075 = vmatprep.mubr.bf16.mxu0 %v250
    %1076 = vmatmul.mubr.bf16.gmra.mrb[0].mxu0 %v249
    %v1077 = vpop.f32.mrb[0].mxu0
    %v1078 = vadd.f32 %v386, %v1077
    %v1079 = vpop.f32.mrb[0].mxu0
    %v1080 = vadd.f32 %v390, %v1079
    %v1081 = vpop.f32.mrb[0].mxu0
    %v1082 = vpop.f32.mrb[0].mxu0
    %1083 = vdwg.mxu0
    %1084 = vmatprep.subr.bf16.mxu0 %v852
    %1085 = vmatpush1.bf16.msra.mxu0 %v851
    %1086 = vmatprep.subr.bf16.mxu0 %v856
    %1087 = vmatpush1.bf16.msra.mxu0 %v855
    %1088 = vmatprep.subr.bf16.mxu0 %v860
    %1089 = vmatpush1.bf16.msra.mxu0 %v859
    %1090 = vmatprep.subr.bf16.mxu0 %v864
    %1091 = vmatpush1.bf16.msra.mxu0 %v863
    %1092 = vmatprep.subr.bf16.mxu0 %v868
    %1093 = vmatpush1.bf16.msra.mxu0 %v867
    %1094 = vmatprep.subr.bf16.mxu0 %v872
    %1095 = vmatpush1.bf16.msra.mxu0 %v871
    %1096 = vmatprep.subr.bf16.mxu0 %v876
    %1097 = vmatpush1.bf16.msra.mxu0 %v875
    %1098 = vmatprep.subr.bf16.mxu0 %v880
    %1099 = vmatpush1.bf16.msra.mxu0 %v879
    %1100 = vmatprep.subr.bf16.mxu0 %v884
    %1101 = vmatpush1.bf16.msra.mxu0 %v883
    %1102 = vmatprep.subr.bf16.mxu0 %v888
    %1103 = vmatpush1.bf16.msra.mxu0 %v887
    %1104 = vmatprep.subr.bf16.mxu0 %v892
    %1105 = vmatpush1.bf16.msra.mxu0 %v891
    %1106 = vmatprep.subr.bf16.mxu0 %v896
    %1107 = vmatpush1.bf16.msra.mxu0 %v895
    %1108 = vmatprep.subr.bf16.mxu0 %v900
    %1109 = vmatpush1.bf16.msra.mxu0 %v899
    %1110 = vmatprep.subr.bf16.mxu0 %v904
    %1111 = vmatpush1.bf16.msra.mxu0 %v903
    %1112 = vmatprep.subr.bf16.mxu0 %v908
    %1113 = vmatpush1.bf16.msra.mxu0 %v907
    %1114 = vmatprep.subr.bf16.mxu0 %v912
    %1115 = vmatpush1.bf16.msra.mxu0 %v911
    %1116 = vmatprep.mubr.bf16.mxu0 %v252
    %1117 = vmatmul.mubr.bf16.gmra.mrb[0].mxu0 %v251
    %v1118 = vpop.f32.mrb[0].mxu0
    %v1119 = vadd.f32 %v1078, %v1118
    %v1120 = vpop.f32.mrb[0].mxu0
    %v1121 = vadd.f32 %v1080, %v1120
    %v1122 = vpop.f32.mrb[0].mxu0
    %v1123 = vpop.f32.mrb[0].mxu0
    %1124 = vdwg.mxu0
    %1125 = vmatprep.subr.bf16.mxu0 %v790
    %1126 = vmatpush1.bf16.msra.mxu0 %v789
    %1127 = vmatprep.subr.bf16.mxu0 %v794
    %1128 = vmatpush1.bf16.msra.mxu0 %v793
    %1129 = vmatprep.subr.bf16.mxu0 %v798
    %1130 = vmatpush1.bf16.msra.mxu0 %v797
    %1131 = vmatprep.subr.bf16.mxu0 %v802
    %1132 = vmatpush1.bf16.msra.mxu0 %v801
    %1133 = vmatprep.subr.bf16.mxu0 %v806
    %1134 = vmatpush1.bf16.msra.mxu0 %v805
    %1135 = vmatprep.subr.bf16.mxu0 %v810
    %1136 = vmatpush1.bf16.msra.mxu0 %v809
    %1137 = vmatprep.subr.bf16.mxu0 %v814
    %1138 = vmatpush1.bf16.msra.mxu0 %v813
    %1139 = vmatprep.subr.bf16.mxu0 %v818
    %1140 = vmatpush1.bf16.msra.mxu0 %v817
    %1141 = vmatprep.subr.bf16.mxu0 %v822
    %1142 = vmatpush1.bf16.msra.mxu0 %v821
    %1143 = vmatprep.subr.bf16.mxu0 %v826
    %1144 = vmatpush1.bf16.msra.mxu0 %v825
    %1145 = vmatprep.subr.bf16.mxu0 %v830
    %1146 = vmatpush1.bf16.msra.mxu0 %v829
    %1147 = vmatprep.subr.bf16.mxu0 %v834
    %1148 = vmatpush1.bf16.msra.mxu0 %v833
    %1149 = vmatprep.subr.bf16.mxu0 %v838
    %1150 = vmatpush1.bf16.msra.mxu0 %v837
    %1151 = vmatprep.subr.bf16.mxu0 %v842
    %1152 = vmatpush1.bf16.msra.mxu0 %v841
    %1153 = vmatprep.subr.bf16.mxu0 %v846
    %1154 = vmatpush1.bf16.msra.mxu0 %v845
    %1155 = vmatprep.subr.bf16.mxu0 %v850
    %1156 = vmatpush1.bf16.msra.mxu0 %v849
    %1157 = vmatprep.mubr.bf16.mxu0 %v250
    %1158 = vmatmul.mubr.bf16.gmra.mrb[0].mxu0 %v249
    %v1159 = vpop.f32.mrb[0].mxu0
    %v1160 = vadd.f32 %v394, %v1159
    %v1161 = vpop.f32.mrb[0].mxu0
    %v1162 = vadd.f32 %v398, %v1161
    %v1163 = vpop.f32.mrb[0].mxu0
    %v1164 = vpop.f32.mrb[0].mxu0
    %1165 = vdwg.mxu0
    %1166 = vmatprep.subr.bf16.mxu0 %v854
    %1167 = vmatpush1.bf16.msra.mxu0 %v853
    %1168 = vmatprep.subr.bf16.mxu0 %v858
    %1169 = vmatpush1.bf16.msra.mxu0 %v857
    %1170 = vmatprep.subr.bf16.mxu0 %v862
    %1171 = vmatpush1.bf16.msra.mxu0 %v861
    %1172 = vmatprep.subr.bf16.mxu0 %v866
    %1173 = vmatpush1.bf16.msra.mxu0 %v865
    %1174 = vmatprep.subr.bf16.mxu0 %v870
    %1175 = vmatpush1.bf16.msra.mxu0 %v869
    %1176 = vmatprep.subr.bf16.mxu0 %v874
    %1177 = vmatpush1.bf16.msra.mxu0 %v873
    %1178 = vmatprep.subr.bf16.mxu0 %v878
    %1179 = vmatpush1.bf16.msra.mxu0 %v877
    %1180 = vmatprep.subr.bf16.mxu0 %v882
    %1181 = vmatpush1.bf16.msra.mxu0 %v881
    %1182 = vmatprep.subr.bf16.mxu0 %v886
    %1183 = vmatpush1.bf16.msra.mxu0 %v885
    %1184 = vmatprep.subr.bf16.mxu0 %v890
    %1185 = vmatpush1.bf16.msra.mxu0 %v889
    %1186 = vmatprep.subr.bf16.mxu0 %v894
    %1187 = vmatpush1.bf16.msra.mxu0 %v893
    %1188 = vmatprep.subr.bf16.mxu0 %v898
    %1189 = vmatpush1.bf16.msra.mxu0 %v897
    %1190 = vmatprep.subr.bf16.mxu0 %v902
    %1191 = vmatpush1.bf16.msra.mxu0 %v901
    %1192 = vmatprep.subr.bf16.mxu0 %v906
    %1193 = vmatpush1.bf16.msra.mxu0 %v905
    %1194 = vmatprep.subr.bf16.mxu0 %v910
    %1195 = vmatpush1.bf16.msra.mxu0 %v909
    %1196 = vmatprep.subr.bf16.mxu0 %v914
    %1197 = vmatpush1.bf16.msra.mxu0 %v913
    %1198 = vmatprep.mubr.bf16.mxu0 %v252
    %1199 = vmatmul.mubr.bf16.gmra.mrb[0].mxu0 %v251
    %v1200 = vpop.f32.mrb[0].mxu0
    %v1201 = vadd.f32 %v1160, %v1200
    %v1202 = vpop.f32.mrb[0].mxu0
    %v1203 = vadd.f32 %v1162, %v1202
    %v1204 = vpop.f32.mrb[0].mxu0
    %v1205 = vpop.f32.mrb[0].mxu0
    %1206 = vdwg.mxu0
    %v1207 = vmax.f32 %v1119, 0.0
    %v1208 = vmax.f32 %v1121, 0.0
    %v1209 = vmax.f32 %v1201, 0.0
    %v1210 = vmax.f32 %v1203, 0.0
    %v1211 = vpack.c.bf16 %v1207, %v1207
    %v1212 = vpack.c.bf16 %v1208, %v1208
    %v1213 = vpack.c.bf16 %v1209, %v1209
    %v1214 = vpack.c.bf16 %v1210, %v1210
    %v1215 = vld [vmem:[#allocation8] sm:$0xff]
    %v1216 = vld [vmem:[#allocation8 + $0x8] sm:$0xff]
    %v1217 = vld [vmem:[#allocation8 + $0x10] sm:$0xff]
    %v1218 = vld [vmem:[#allocation8 + $0x18] sm:$0xff]
    %v1219 = vld [vmem:[#allocation8 + $0x20] sm:$0xff]
    %v1220 = vld [vmem:[#allocation8 + $0x28] sm:$0xff]
    %v1221 = vld [vmem:[#allocation8 + $0x30] sm:$0xff]
    %v1222 = vld [vmem:[#allocation8 + $0x38] sm:$0xff]
    %v1223 = vld [vmem:[#allocation8 + $0x40] sm:$0xff]
    %v1224 = vld [vmem:[#allocation8 + $0x48] sm:$0xff]
    %v1225 = vld [vmem:[#allocation8 + $0x50] sm:$0xff]
    %v1226 = vld [vmem:[#allocation8 + $0x58] sm:$0xff]
    %v1227 = vld [vmem:[#allocation8 + $0x60] sm:$0xff]
    %v1228 = vld [vmem:[#allocation8 + $0x68] sm:$0xff]
    %v1229 = vld [vmem:[#allocation8 + $0x70] sm:$0xff]
    %v1230 = vld [vmem:[#allocation8 + $0x78] sm:$0xff]
    %v1231 = vld [vmem:[#allocation8 + $0x80] sm:$0xff]
    %v1232 = vld [vmem:[#allocation8 + $0x88] sm:$0xff]
    %v1233 = vld [vmem:[#allocation8 + $0x90] sm:$0xff]
    %v1234 = vld [vmem:[#allocation8 + $0x98] sm:$0xff]
    %v1235 = vld [vmem:[#allocation8 + $0xa0] sm:$0xff]
    %v1236 = vld [vmem:[#allocation8 + $0xa8] sm:$0xff]
    %v1237 = vld [vmem:[#allocation8 + $0xb0] sm:$0xff]
    %v1238 = vld [vmem:[#allocation8 + $0xb8] sm:$0xff]
    %v1239 = vld [vmem:[#allocation8 + $0xc0] sm:$0xff]
    %v1240 = vld [vmem:[#allocation8 + $0xc8] sm:$0xff]
    %v1241 = vld [vmem:[#allocation8 + $0xd0] sm:$0xff]
    %v1242 = vld [vmem:[#allocation8 + $0xd8] sm:$0xff]
    %v1243 = vld [vmem:[#allocation8 + $0xe0] sm:$0xff]
    %v1244 = vld [vmem:[#allocation8 + $0xe8] sm:$0xff]
    %v1245 = vld [vmem:[#allocation8 + $0xf0] sm:$0xff]
    %v1246 = vld [vmem:[#allocation8 + $0xf8] sm:$0xff]
    %v1247 = vld [vmem:[#allocation8 + $0x100] sm:$0xff]
    %v1248 = vld [vmem:[#allocation8 + $0x108] sm:$0xff]
    %v1249 = vld [vmem:[#allocation8 + $0x110] sm:$0xff]
    %v1250 = vld [vmem:[#allocation8 + $0x118] sm:$0xff]
    %v1251 = vld [vmem:[#allocation8 + $0x120] sm:$0xff]
    %v1252 = vld [vmem:[#allocation8 + $0x128] sm:$0xff]
    %v1253 = vld [vmem:[#allocation8 + $0x130] sm:$0xff]
    %v1254 = vld [vmem:[#allocation8 + $0x138] sm:$0xff]
    %v1255 = vld [vmem:[#allocation8 + $0x140] sm:$0xff]
    %v1256 = vld [vmem:[#allocation8 + $0x148] sm:$0xff]
    %v1257 = vld [vmem:[#allocation8 + $0x150] sm:$0xff]
    %v1258 = vld [vmem:[#allocation8 + $0x158] sm:$0xff]
    %v1259 = vld [vmem:[#allocation8 + $0x160] sm:$0xff]
    %v1260 = vld [vmem:[#allocation8 + $0x168] sm:$0xff]
    %v1261 = vld [vmem:[#allocation8 + $0x170] sm:$0xff]
    %v1262 = vld [vmem:[#allocation8 + $0x178] sm:$0xff]
    %v1263 = vld [vmem:[#allocation8 + $0x180] sm:$0xff]
    %v1264 = vld [vmem:[#allocation8 + $0x188] sm:$0xff]
    %v1265 = vld [vmem:[#allocation8 + $0x190] sm:$0xff]
    %v1266 = vld [vmem:[#allocation8 + $0x198] sm:$0xff]
    %v1267 = vld [vmem:[#allocation8 + $0x1a0] sm:$0xff]
    %v1268 = vld [vmem:[#allocation8 + $0x1a8] sm:$0xff]
    %v1269 = vld [vmem:[#allocation8 + $0x1b0] sm:$0xff]
    %v1270 = vld [vmem:[#allocation8 + $0x1b8] sm:$0xff]
    %v1271 = vld [vmem:[#allocation8 + $0x1c0] sm:$0xff]
    %v1272 = vld [vmem:[#allocation8 + $0x1c8] sm:$0xff]
    %v1273 = vld [vmem:[#allocation8 + $0x1d0] sm:$0xff]
    %v1274 = vld [vmem:[#allocation8 + $0x1d8] sm:$0xff]
    %v1275 = vld [vmem:[#allocation8 + $0x1e0] sm:$0xff]
    %v1276 = vld [vmem:[#allocation8 + $0x1e8] sm:$0xff]
    %v1277 = vld [vmem:[#allocation8 + $0x1f0] sm:$0xff]
    %v1278 = vld [vmem:[#allocation8 + $0x1f8] sm:$0xff]
    %v1279 = vld [vmem:[#allocation8 + $0x200] sm:$0xff]
    %v1280 = vld [vmem:[#allocation8 + $0x208] sm:$0xff]
    %v1281 = vld [vmem:[#allocation8 + $0x210] sm:$0xff]
    %v1282 = vld [vmem:[#allocation8 + $0x218] sm:$0xff]
    %v1283 = vld [vmem:[#allocation8 + $0x220] sm:$0xff]
    %v1284 = vld [vmem:[#allocation8 + $0x228] sm:$0xff]
    %v1285 = vld [vmem:[#allocation8 + $0x230] sm:$0xff]
    %v1286 = vld [vmem:[#allocation8 + $0x238] sm:$0xff]
    %v1287 = vld [vmem:[#allocation8 + $0x240] sm:$0xff]
    %v1288 = vld [vmem:[#allocation8 + $0x248] sm:$0xff]
    %v1289 = vld [vmem:[#allocation8 + $0x250] sm:$0xff]
    %v1290 = vld [vmem:[#allocation8 + $0x258] sm:$0xff]
    %v1291 = vld [vmem:[#allocation8 + $0x260] sm:$0xff]
    %v1292 = vld [vmem:[#allocation8 + $0x268] sm:$0xff]
    %v1293 = vld [vmem:[#allocation8 + $0x270] sm:$0xff]
    %v1294 = vld [vmem:[#allocation8 + $0x278] sm:$0xff]
    %v1295 = vld [vmem:[#allocation8 + $0x280] sm:$0xff]
    %v1296 = vld [vmem:[#allocation8 + $0x288] sm:$0xff]
    %v1297 = vld [vmem:[#allocation8 + $0x290] sm:$0xff]
    %v1298 = vld [vmem:[#allocation8 + $0x298] sm:$0xff]
    %v1299 = vld [vmem:[#allocation8 + $0x2a0] sm:$0xff]
    %v1300 = vld [vmem:[#allocation8 + $0x2a8] sm:$0xff]
    %v1301 = vld [vmem:[#allocation8 + $0x2b0] sm:$0xff]
    %v1302 = vld [vmem:[#allocation8 + $0x2b8] sm:$0xff]
    %v1303 = vld [vmem:[#allocation8 + $0x2c0] sm:$0xff]
    %v1304 = vld [vmem:[#allocation8 + $0x2c8] sm:$0xff]
    %v1305 = vld [vmem:[#allocation8 + $0x2d0] sm:$0xff]
    %v1306 = vld [vmem:[#allocation8 + $0x2d8] sm:$0xff]
    %v1307 = vld [vmem:[#allocation8 + $0x2e0] sm:$0xff]
    %v1308 = vld [vmem:[#allocation8 + $0x2e8] sm:$0xff]
    %v1309 = vld [vmem:[#allocation8 + $0x2f0] sm:$0xff]
    %v1310 = vld [vmem:[#allocation8 + $0x2f8] sm:$0xff]
    %v1311 = vld [vmem:[#allocation8 + $0x300] sm:$0xff]
    %v1312 = vld [vmem:[#allocation8 + $0x308] sm:$0xff]
    %v1313 = vld [vmem:[#allocation8 + $0x310] sm:$0xff]
    %v1314 = vld [vmem:[#allocation8 + $0x318] sm:$0xff]
    %v1315 = vld [vmem:[#allocation8 + $0x320] sm:$0xff]
    %v1316 = vld [vmem:[#allocation8 + $0x328] sm:$0xff]
    %v1317 = vld [vmem:[#allocation8 + $0x330] sm:$0xff]
    %v1318 = vld [vmem:[#allocation8 + $0x338] sm:$0xff]
    %v1319 = vld [vmem:[#allocation8 + $0x340] sm:$0xff]
    %v1320 = vld [vmem:[#allocation8 + $0x348] sm:$0xff]
    %v1321 = vld [vmem:[#allocation8 + $0x350] sm:$0xff]
    %v1322 = vld [vmem:[#allocation8 + $0x358] sm:$0xff]
    %v1323 = vld [vmem:[#allocation8 + $0x360] sm:$0xff]
    %v1324 = vld [vmem:[#allocation8 + $0x368] sm:$0xff]
    %v1325 = vld [vmem:[#allocation8 + $0x370] sm:$0xff]
    %v1326 = vld [vmem:[#allocation8 + $0x378] sm:$0xff]
    %v1327 = vld [vmem:[#allocation8 + $0x380] sm:$0xff]
    %v1328 = vld [vmem:[#allocation8 + $0x388] sm:$0xff]
    %v1329 = vld [vmem:[#allocation8 + $0x390] sm:$0xff]
    %v1330 = vld [vmem:[#allocation8 + $0x398] sm:$0xff]
    %v1331 = vld [vmem:[#allocation8 + $0x3a0] sm:$0xff]
    %v1332 = vld [vmem:[#allocation8 + $0x3a8] sm:$0xff]
    %v1333 = vld [vmem:[#allocation8 + $0x3b0] sm:$0xff]
    %v1334 = vld [vmem:[#allocation8 + $0x3b8] sm:$0xff]
    %v1335 = vld [vmem:[#allocation8 + $0x3c0] sm:$0xff]
    %v1336 = vld [vmem:[#allocation8 + $0x3c8] sm:$0xff]
    %v1337 = vld [vmem:[#allocation8 + $0x3d0] sm:$0xff]
    %v1338 = vld [vmem:[#allocation8 + $0x3d8] sm:$0xff]
    %v1339 = vld [vmem:[#allocation8 + $0x3e0] sm:$0xff]
    %v1340 = vld [vmem:[#allocation8 + $0x3e8] sm:$0xff]
    %v1341 = vld [vmem:[#allocation8 + $0x3f0] sm:$0xff]
    %v1342 = vld [vmem:[#allocation8 + $0x3f8] sm:$0xff]
    %v1343 = vld [vmem:[%s6] sm:$0xf]
    %v1345 = vlaneseq
    %v1346 = vshrl.u32 %v1345, 7
    %v1347 = vsub.s32 0, %v1346
    %v1348 = vrot.slane %v1343, %v1347
    %v1349 = vlaneseq
    %v1350 = vshrl.u32 %v1349, 7
    %v1351 = vsub.s32 1, %v1350
    %v1352 = vrot.slane %v1343, %v1351
    %v1353 = vlaneseq
    %v1354 = vshrl.u32 %v1353, 7
    %v1355 = vsub.s32 2, %v1354
    %v1356 = vrot.slane %v1343, %v1355
    %v1357 = vlaneseq
    %v1358 = vshrl.u32 %v1357, 7
    %v1359 = vsub.s32 3, %v1358
    %v1360 = vrot.slane %v1343, %v1359
    %v1493 = vunpack.c.l.b16 %v1215
    %v1494 = vunpack.c.h.b16 %v1215
    %v1495 = vunpack.c.l.b16 %v1216
    %v1496 = vunpack.c.h.b16 %v1216
    %v1497 = vunpack.c.l.b16 %v1217
    %v1498 = vunpack.c.h.b16 %v1217
    %v1499 = vunpack.c.l.b16 %v1218
    %v1500 = vunpack.c.h.b16 %v1218
    %v1501 = vunpack.c.l.b16 %v1219
    %v1502 = vunpack.c.h.b16 %v1219
    %v1503 = vunpack.c.l.b16 %v1220
    %v1504 = vunpack.c.h.b16 %v1220
    %v1505 = vunpack.c.l.b16 %v1221
    %v1506 = vunpack.c.h.b16 %v1221
    %v1507 = vunpack.c.l.b16 %v1222
    %v1508 = vunpack.c.h.b16 %v1222
    %v1509 = vunpack.c.l.b16 %v1223
    %v1510 = vunpack.c.h.b16 %v1223
    %v1511 = vunpack.c.l.b16 %v1224
    %v1512 = vunpack.c.h.b16 %v1224
    %v1513 = vunpack.c.l.b16 %v1225
    %v1514 = vunpack.c.h.b16 %v1225
    %v1515 = vunpack.c.l.b16 %v1226
    %v1516 = vunpack.c.h.b16 %v1226
    %v1517 = vunpack.c.l.b16 %v1227
    %v1518 = vunpack.c.h.b16 %v1227
    %v1519 = vunpack.c.l.b16 %v1228
    %v1520 = vunpack.c.h.b16 %v1228
    %v1521 = vunpack.c.l.b16 %v1229
    %v1522 = vunpack.c.h.b16 %v1229
    %v1523 = vunpack.c.l.b16 %v1230
    %v1524 = vunpack.c.h.b16 %v1230
    %v1525 = vunpack.c.l.b16 %v1231
    %v1526 = vunpack.c.h.b16 %v1231
    %v1527 = vunpack.c.l.b16 %v1232
    %v1528 = vunpack.c.h.b16 %v1232
    %v1529 = vunpack.c.l.b16 %v1233
    %v1530 = vunpack.c.h.b16 %v1233
    %v1531 = vunpack.c.l.b16 %v1234
    %v1532 = vunpack.c.h.b16 %v1234
    %v1533 = vunpack.c.l.b16 %v1235
    %v1534 = vunpack.c.h.b16 %v1235
    %v1535 = vunpack.c.l.b16 %v1236
    %v1536 = vunpack.c.h.b16 %v1236
    %v1537 = vunpack.c.l.b16 %v1237
    %v1538 = vunpack.c.h.b16 %v1237
    %v1539 = vunpack.c.l.b16 %v1238
    %v1540 = vunpack.c.h.b16 %v1238
    %v1541 = vunpack.c.l.b16 %v1239
    %v1542 = vunpack.c.h.b16 %v1239
    %v1543 = vunpack.c.l.b16 %v1240
    %v1544 = vunpack.c.h.b16 %v1240
    %v1545 = vunpack.c.l.b16 %v1241
    %v1546 = vunpack.c.h.b16 %v1241
    %v1547 = vunpack.c.l.b16 %v1242
    %v1548 = vunpack.c.h.b16 %v1242
    %v1549 = vunpack.c.l.b16 %v1243
    %v1550 = vunpack.c.h.b16 %v1243
    %v1551 = vunpack.c.l.b16 %v1244
    %v1552 = vunpack.c.h.b16 %v1244
    %v1553 = vunpack.c.l.b16 %v1245
    %v1554 = vunpack.c.h.b16 %v1245
    %v1555 = vunpack.c.l.b16 %v1246
    %v1556 = vunpack.c.h.b16 %v1246
    %v1557 = vunpack.c.l.b16 %v1247
    %v1558 = vunpack.c.h.b16 %v1247
    %v1559 = vunpack.c.l.b16 %v1248
    %v1560 = vunpack.c.h.b16 %v1248
    %v1561 = vunpack.c.l.b16 %v1249
    %v1562 = vunpack.c.h.b16 %v1249
    %v1563 = vunpack.c.l.b16 %v1250
    %v1564 = vunpack.c.h.b16 %v1250
    %v1565 = vunpack.c.l.b16 %v1251
    %v1566 = vunpack.c.h.b16 %v1251
    %v1567 = vunpack.c.l.b16 %v1252
    %v1568 = vunpack.c.h.b16 %v1252
    %v1569 = vunpack.c.l.b16 %v1253
    %v1570 = vunpack.c.h.b16 %v1253
    %v1571 = vunpack.c.l.b16 %v1254
    %v1572 = vunpack.c.h.b16 %v1254
    %v1573 = vunpack.c.l.b16 %v1255
    %v1574 = vunpack.c.h.b16 %v1255
    %v1575 = vunpack.c.l.b16 %v1256
    %v1576 = vunpack.c.h.b16 %v1256
    %v1577 = vunpack.c.l.b16 %v1257
    %v1578 = vunpack.c.h.b16 %v1257
    %v1579 = vunpack.c.l.b16 %v1258
    %v1580 = vunpack.c.h.b16 %v1258
    %v1581 = vunpack.c.l.b16 %v1259
    %v1582 = vunpack.c.h.b16 %v1259
    %v1583 = vunpack.c.l.b16 %v1260
    %v1584 = vunpack.c.h.b16 %v1260
    %v1585 = vunpack.c.l.b16 %v1261
    %v1586 = vunpack.c.h.b16 %v1261
    %v1587 = vunpack.c.l.b16 %v1262
    %v1588 = vunpack.c.h.b16 %v1262
    %v1589 = vunpack.c.l.b16 %v1263
    %v1590 = vunpack.c.h.b16 %v1263
    %v1591 = vunpack.c.l.b16 %v1264
    %v1592 = vunpack.c.h.b16 %v1264
    %v1593 = vunpack.c.l.b16 %v1265
    %v1594 = vunpack.c.h.b16 %v1265
    %v1595 = vunpack.c.l.b16 %v1266
    %v1596 = vunpack.c.h.b16 %v1266
    %v1597 = vunpack.c.l.b16 %v1267
    %v1598 = vunpack.c.h.b16 %v1267
    %v1599 = vunpack.c.l.b16 %v1268
    %v1600 = vunpack.c.h.b16 %v1268
    %v1601 = vunpack.c.l.b16 %v1269
    %v1602 = vunpack.c.h.b16 %v1269
    %v1603 = vunpack.c.l.b16 %v1270
    %v1604 = vunpack.c.h.b16 %v1270
    %v1605 = vunpack.c.l.b16 %v1271
    %v1606 = vunpack.c.h.b16 %v1271
    %v1607 = vunpack.c.l.b16 %v1272
    %v1608 = vunpack.c.h.b16 %v1272
    %v1609 = vunpack.c.l.b16 %v1273
    %v1610 = vunpack.c.h.b16 %v1273
    %v1611 = vunpack.c.l.b16 %v1274
    %v1612 = vunpack.c.h.b16 %v1274
    %v1613 = vunpack.c.l.b16 %v1275
    %v1614 = vunpack.c.h.b16 %v1275
    %v1615 = vunpack.c.l.b16 %v1276
    %v1616 = vunpack.c.h.b16 %v1276
    %v1617 = vunpack.c.l.b16 %v1277
    %v1618 = vunpack.c.h.b16 %v1277
    %v1619 = vunpack.c.l.b16 %v1278
    %v1620 = vunpack.c.h.b16 %v1278
    %v1621 = vunpack.c.l.b16 %v1279
    %v1622 = vunpack.c.h.b16 %v1279
    %v1623 = vunpack.c.l.b16 %v1280
    %v1624 = vunpack.c.h.b16 %v1280
    %v1625 = vunpack.c.l.b16 %v1281
    %v1626 = vunpack.c.h.b16 %v1281
    %v1627 = vunpack.c.l.b16 %v1282
    %v1628 = vunpack.c.h.b16 %v1282
    %v1629 = vunpack.c.l.b16 %v1283
    %v1630 = vunpack.c.h.b16 %v1283
    %v1631 = vunpack.c.l.b16 %v1284
    %v1632 = vunpack.c.h.b16 %v1284
    %v1633 = vunpack.c.l.b16 %v1285
    %v1634 = vunpack.c.h.b16 %v1285
    %v1635 = vunpack.c.l.b16 %v1286
    %v1636 = vunpack.c.h.b16 %v1286
    %v1637 = vunpack.c.l.b16 %v1287
    %v1638 = vunpack.c.h.b16 %v1287
    %v1639 = vunpack.c.l.b16 %v1288
    %v1640 = vunpack.c.h.b16 %v1288
    %v1641 = vunpack.c.l.b16 %v1289
    %v1642 = vunpack.c.h.b16 %v1289
    %v1643 = vunpack.c.l.b16 %v1290
    %v1644 = vunpack.c.h.b16 %v1290
    %v1645 = vunpack.c.l.b16 %v1291
    %v1646 = vunpack.c.h.b16 %v1291
    %v1647 = vunpack.c.l.b16 %v1292
    %v1648 = vunpack.c.h.b16 %v1292
    %v1649 = vunpack.c.l.b16 %v1293
    %v1650 = vunpack.c.h.b16 %v1293
    %v1651 = vunpack.c.l.b16 %v1294
    %v1652 = vunpack.c.h.b16 %v1294
    %v1653 = vunpack.c.l.b16 %v1295
    %v1654 = vunpack.c.h.b16 %v1295
    %v1655 = vunpack.c.l.b16 %v1296
    %v1656 = vunpack.c.h.b16 %v1296
    %v1657 = vunpack.c.l.b16 %v1297
    %v1658 = vunpack.c.h.b16 %v1297
    %v1659 = vunpack.c.l.b16 %v1298
    %v1660 = vunpack.c.h.b16 %v1298
    %v1661 = vunpack.c.l.b16 %v1299
    %v1662 = vunpack.c.h.b16 %v1299
    %v1663 = vunpack.c.l.b16 %v1300
    %v1664 = vunpack.c.h.b16 %v1300
    %v1665 = vunpack.c.l.b16 %v1301
    %v1666 = vunpack.c.h.b16 %v1301
    %v1667 = vunpack.c.l.b16 %v1302
    %v1668 = vunpack.c.h.b16 %v1302
    %v1669 = vunpack.c.l.b16 %v1303
    %v1670 = vunpack.c.h.b16 %v1303
    %v1671 = vunpack.c.l.b16 %v1304
    %v1672 = vunpack.c.h.b16 %v1304
    %v1673 = vunpack.c.l.b16 %v1305
    %v1674 = vunpack.c.h.b16 %v1305
    %v1675 = vunpack.c.l.b16 %v1306
    %v1676 = vunpack.c.h.b16 %v1306
    %v1677 = vunpack.c.l.b16 %v1307
    %v1678 = vunpack.c.h.b16 %v1307
    %v1679 = vunpack.c.l.b16 %v1308
    %v1680 = vunpack.c.h.b16 %v1308
    %v1681 = vunpack.c.l.b16 %v1309
    %v1682 = vunpack.c.h.b16 %v1309
    %v1683 = vunpack.c.l.b16 %v1310
    %v1684 = vunpack.c.h.b16 %v1310
    %v1685 = vunpack.c.l.b16 %v1311
    %v1686 = vunpack.c.h.b16 %v1311
    %v1687 = vunpack.c.l.b16 %v1312
    %v1688 = vunpack.c.h.b16 %v1312
    %v1689 = vunpack.c.l.b16 %v1313
    %v1690 = vunpack.c.h.b16 %v1313
    %v1691 = vunpack.c.l.b16 %v1314
    %v1692 = vunpack.c.h.b16 %v1314
    %v1693 = vunpack.c.l.b16 %v1315
    %v1694 = vunpack.c.h.b16 %v1315
    %v1695 = vunpack.c.l.b16 %v1316
    %v1696 = vunpack.c.h.b16 %v1316
    %v1697 = vunpack.c.l.b16 %v1317
    %v1698 = vunpack.c.h.b16 %v1317
    %v1699 = vunpack.c.l.b16 %v1318
    %v1700 = vunpack.c.h.b16 %v1318
    %v1701 = vunpack.c.l.b16 %v1319
    %v1702 = vunpack.c.h.b16 %v1319
    %v1703 = vunpack.c.l.b16 %v1320
    %v1704 = vunpack.c.h.b16 %v1320
    %v1705 = vunpack.c.l.b16 %v1321
    %v1706 = vunpack.c.h.b16 %v1321
    %v1707 = vunpack.c.l.b16 %v1322
    %v1708 = vunpack.c.h.b16 %v1322
    %v1709 = vunpack.c.l.b16 %v1323
    %v1710 = vunpack.c.h.b16 %v1323
    %v1711 = vunpack.c.l.b16 %v1324
    %v1712 = vunpack.c.h.b16 %v1324
    %v1713 = vunpack.c.l.b16 %v1325
    %v1714 = vunpack.c.h.b16 %v1325
    %v1715 = vunpack.c.l.b16 %v1326
    %v1716 = vunpack.c.h.b16 %v1326
    %v1717 = vunpack.c.l.b16 %v1327
    %v1718 = vunpack.c.h.b16 %v1327
    %v1719 = vunpack.c.l.b16 %v1328
    %v1720 = vunpack.c.h.b16 %v1328
    %v1721 = vunpack.c.l.b16 %v1329
    %v1722 = vunpack.c.h.b16 %v1329
    %v1723 = vunpack.c.l.b16 %v1330
    %v1724 = vunpack.c.h.b16 %v1330
    %v1725 = vunpack.c.l.b16 %v1331
    %v1726 = vunpack.c.h.b16 %v1331
    %v1727 = vunpack.c.l.b16 %v1332
    %v1728 = vunpack.c.h.b16 %v1332
    %v1729 = vunpack.c.l.b16 %v1333
    %v1730 = vunpack.c.h.b16 %v1333
    %v1731 = vunpack.c.l.b16 %v1334
    %v1732 = vunpack.c.h.b16 %v1334
    %v1733 = vunpack.c.l.b16 %v1335
    %v1734 = vunpack.c.h.b16 %v1335
    %v1735 = vunpack.c.l.b16 %v1336
    %v1736 = vunpack.c.h.b16 %v1336
    %v1737 = vunpack.c.l.b16 %v1337
    %v1738 = vunpack.c.h.b16 %v1337
    %v1739 = vunpack.c.l.b16 %v1338
    %v1740 = vunpack.c.h.b16 %v1338
    %v1741 = vunpack.c.l.b16 %v1339
    %v1742 = vunpack.c.h.b16 %v1339
    %v1743 = vunpack.c.l.b16 %v1340
    %v1744 = vunpack.c.h.b16 %v1340
    %v1745 = vunpack.c.l.b16 %v1341
    %v1746 = vunpack.c.h.b16 %v1341
    %v1747 = vunpack.c.l.b16 %v1342
    %v1748 = vunpack.c.h.b16 %v1342
    %v1749 = vpack.c.b16 %v1497, %v1493
    %v1750 = vpack.c.b16 %v1498, %v1494
    %v1751 = vpack.c.b16 %v1499, %v1495
    %v1752 = vpack.c.b16 %v1500, %v1496
    %v1753 = vpack.c.b16 %v1505, %v1501
    %v1754 = vpack.c.b16 %v1506, %v1502
    %v1755 = vpack.c.b16 %v1507, %v1503
    %v1756 = vpack.c.b16 %v1508, %v1504
    %v1757 = vpack.c.b16 %v1513, %v1509
    %v1758 = vpack.c.b16 %v1514, %v1510
    %v1759 = vpack.c.b16 %v1515, %v1511
    %v1760 = vpack.c.b16 %v1516, %v1512
    %v1761 = vpack.c.b16 %v1521, %v1517
    %v1762 = vpack.c.b16 %v1522, %v1518
    %v1763 = vpack.c.b16 %v1523, %v1519
    %v1764 = vpack.c.b16 %v1524, %v1520
    %v1765 = vpack.c.b16 %v1529, %v1525
    %v1766 = vpack.c.b16 %v1530, %v1526
    %v1767 = vpack.c.b16 %v1531, %v1527
    %v1768 = vpack.c.b16 %v1532, %v1528
    %v1769 = vpack.c.b16 %v1537, %v1533
    %v1770 = vpack.c.b16 %v1538, %v1534
    %v1771 = vpack.c.b16 %v1539, %v1535
    %v1772 = vpack.c.b16 %v1540, %v1536
    %v1773 = vpack.c.b16 %v1545, %v1541
    %v1774 = vpack.c.b16 %v1546, %v1542
    %v1775 = vpack.c.b16 %v1547, %v1543
    %v1776 = vpack.c.b16 %v1548, %v1544
    %v1777 = vpack.c.b16 %v1553, %v1549
    %v1778 = vpack.c.b16 %v1554, %v1550
    %v1779 = vpack.c.b16 %v1555, %v1551
    %v1780 = vpack.c.b16 %v1556, %v1552
    %v1781 = vpack.c.b16 %v1561, %v1557
    %v1782 = vpack.c.b16 %v1562, %v1558
    %v1783 = vpack.c.b16 %v1563, %v1559
    %v1784 = vpack.c.b16 %v1564, %v1560
    %v1785 = vpack.c.b16 %v1569, %v1565
    %v1786 = vpack.c.b16 %v1570, %v1566
    %v1787 = vpack.c.b16 %v1571, %v1567
    %v1788 = vpack.c.b16 %v1572, %v1568
    %v1789 = vpack.c.b16 %v1577, %v1573
    %v1790 = vpack.c.b16 %v1578, %v1574
    %v1791 = vpack.c.b16 %v1579, %v1575
    %v1792 = vpack.c.b16 %v1580, %v1576
    %v1793 = vpack.c.b16 %v1585, %v1581
    %v1794 = vpack.c.b16 %v1586, %v1582
    %v1795 = vpack.c.b16 %v1587, %v1583
    %v1796 = vpack.c.b16 %v1588, %v1584
    %v1797 = vpack.c.b16 %v1593, %v1589
    %v1798 = vpack.c.b16 %v1594, %v1590
    %v1799 = vpack.c.b16 %v1595, %v1591
    %v1800 = vpack.c.b16 %v1596, %v1592
    %v1801 = vpack.c.b16 %v1601, %v1597
    %v1802 = vpack.c.b16 %v1602, %v1598
    %v1803 = vpack.c.b16 %v1603, %v1599
    %v1804 = vpack.c.b16 %v1604, %v1600
    %v1805 = vpack.c.b16 %v1609, %v1605
    %v1806 = vpack.c.b16 %v1610, %v1606
    %v1807 = vpack.c.b16 %v1611, %v1607
    %v1808 = vpack.c.b16 %v1612, %v1608
    %v1809 = vpack.c.b16 %v1617, %v1613
    %v1810 = vpack.c.b16 %v1618, %v1614
    %v1811 = vpack.c.b16 %v1619, %v1615
    %v1812 = vpack.c.b16 %v1620, %v1616
    %v1813 = vpack.c.b16 %v1625, %v1621
    %v1814 = vpack.c.b16 %v1626, %v1622
    %v1815 = vpack.c.b16 %v1627, %v1623
    %v1816 = vpack.c.b16 %v1628, %v1624
    %v1817 = vpack.c.b16 %v1633, %v1629
    %v1818 = vpack.c.b16 %v1634, %v1630
    %v1819 = vpack.c.b16 %v1635, %v1631
    %v1820 = vpack.c.b16 %v1636, %v1632
    %v1821 = vpack.c.b16 %v1641, %v1637
    %v1822 = vpack.c.b16 %v1642, %v1638
    %v1823 = vpack.c.b16 %v1643, %v1639
    %v1824 = vpack.c.b16 %v1644, %v1640
    %v1825 = vpack.c.b16 %v1649, %v1645
    %v1826 = vpack.c.b16 %v1650, %v1646
    %v1827 = vpack.c.b16 %v1651, %v1647
    %v1828 = vpack.c.b16 %v1652, %v1648
    %v1829 = vpack.c.b16 %v1657, %v1653
    %v1830 = vpack.c.b16 %v1658, %v1654
    %v1831 = vpack.c.b16 %v1659, %v1655
    %v1832 = vpack.c.b16 %v1660, %v1656
    %v1833 = vpack.c.b16 %v1665, %v1661
    %v1834 = vpack.c.b16 %v1666, %v1662
    %v1835 = vpack.c.b16 %v1667, %v1663
    %v1836 = vpack.c.b16 %v1668, %v1664
    %v1837 = vpack.c.b16 %v1673, %v1669
    %v1838 = vpack.c.b16 %v1674, %v1670
    %v1839 = vpack.c.b16 %v1675, %v1671
    %v1840 = vpack.c.b16 %v1676, %v1672
    %v1841 = vpack.c.b16 %v1681, %v1677
    %v1842 = vpack.c.b16 %v1682, %v1678
    %v1843 = vpack.c.b16 %v1683, %v1679
    %v1844 = vpack.c.b16 %v1684, %v1680
    %v1845 = vpack.c.b16 %v1689, %v1685
    %v1846 = vpack.c.b16 %v1690, %v1686
    %v1847 = vpack.c.b16 %v1691, %v1687
    %v1848 = vpack.c.b16 %v1692, %v1688
    %v1849 = vpack.c.b16 %v1697, %v1693
    %v1850 = vpack.c.b16 %v1698, %v1694
    %v1851 = vpack.c.b16 %v1699, %v1695
    %v1852 = vpack.c.b16 %v1700, %v1696
    %v1853 = vpack.c.b16 %v1705, %v1701
    %v1854 = vpack.c.b16 %v1706, %v1702
    %v1855 = vpack.c.b16 %v1707, %v1703
    %v1856 = vpack.c.b16 %v1708, %v1704
    %v1857 = vpack.c.b16 %v1713, %v1709
    %v1858 = vpack.c.b16 %v1714, %v1710
    %v1859 = vpack.c.b16 %v1715, %v1711
    %v1860 = vpack.c.b16 %v1716, %v1712
    %v1861 = vpack.c.b16 %v1721, %v1717
    %v1862 = vpack.c.b16 %v1722, %v1718
    %v1863 = vpack.c.b16 %v1723, %v1719
    %v1864 = vpack.c.b16 %v1724, %v1720
    %v1865 = vpack.c.b16 %v1729, %v1725
    %v1866 = vpack.c.b16 %v1730, %v1726
    %v1867 = vpack.c.b16 %v1731, %v1727
    %v1868 = vpack.c.b16 %v1732, %v1728
    %v1869 = vpack.c.b16 %v1737, %v1733
    %v1870 = vpack.c.b16 %v1738, %v1734
    %v1871 = vpack.c.b16 %v1739, %v1735
    %v1872 = vpack.c.b16 %v1740, %v1736
    %v1873 = vpack.c.b16 %v1745, %v1741
    %v1874 = vpack.c.b16 %v1746, %v1742
    %v1875 = vpack.c.b16 %v1747, %v1743
    %v1876 = vpack.c.b16 %v1748, %v1744
    %2005 = vmatprep.subr.bf16.mxu0 %v1750
    %2006 = vmatpush1.bf16.msra.mxu0 %v1749
    %2007 = vmatprep.subr.bf16.mxu0 %v1754
    %2008 = vmatpush1.bf16.msra.mxu0 %v1753
    %2009 = vmatprep.subr.bf16.mxu0 %v1758
    %2010 = vmatpush1.bf16.msra.mxu0 %v1757
    %2011 = vmatprep.subr.bf16.mxu0 %v1762
    %2012 = vmatpush1.bf16.msra.mxu0 %v1761
    %2013 = vmatprep.subr.bf16.mxu0 %v1766
    %2014 = vmatpush1.bf16.msra.mxu0 %v1765
    %2015 = vmatprep.subr.bf16.mxu0 %v1770
    %2016 = vmatpush1.bf16.msra.mxu0 %v1769
    %2017 = vmatprep.subr.bf16.mxu0 %v1774
    %2018 = vmatpush1.bf16.msra.mxu0 %v1773
    %2019 = vmatprep.subr.bf16.mxu0 %v1778
    %2020 = vmatpush1.bf16.msra.mxu0 %v1777
    %2021 = vmatprep.subr.bf16.mxu0 %v1782
    %2022 = vmatpush1.bf16.msra.mxu0 %v1781
    %2023 = vmatprep.subr.bf16.mxu0 %v1786
    %2024 = vmatpush1.bf16.msra.mxu0 %v1785
    %2025 = vmatprep.subr.bf16.mxu0 %v1790
    %2026 = vmatpush1.bf16.msra.mxu0 %v1789
    %2027 = vmatprep.subr.bf16.mxu0 %v1794
    %2028 = vmatpush1.bf16.msra.mxu0 %v1793
    %2029 = vmatprep.subr.bf16.mxu0 %v1798
    %2030 = vmatpush1.bf16.msra.mxu0 %v1797
    %2031 = vmatprep.subr.bf16.mxu0 %v1802
    %2032 = vmatpush1.bf16.msra.mxu0 %v1801
    %2033 = vmatprep.subr.bf16.mxu0 %v1806
    %2034 = vmatpush1.bf16.msra.mxu0 %v1805
    %2035 = vmatprep.subr.bf16.mxu0 %v1810
    %2036 = vmatpush1.bf16.msra.mxu0 %v1809
    %2037 = vmatprep.mubr.bf16.mxu0 %v1212
    %2038 = vmatmul.mubr.bf16.gmra.mrb[0].mxu0 %v1211
    %v2039 = vpop.f32.mrb[0].mxu0
    %v2040 = vadd.f32 %v1348, %v2039
    %v2041 = vpop.f32.mrb[0].mxu0
    %v2042 = vadd.f32 %v1352, %v2041
    %v2043 = vpop.f32.mrb[0].mxu0
    %v2044 = vpop.f32.mrb[0].mxu0
    %2045 = vdwg.mxu0
    %2046 = vmatprep.subr.bf16.mxu0 %v1814
    %2047 = vmatpush1.bf16.msra.mxu0 %v1813
    %2048 = vmatprep.subr.bf16.mxu0 %v1818
    %2049 = vmatpush1.bf16.msra.mxu0 %v1817
    %2050 = vmatprep.subr.bf16.mxu0 %v1822
    %2051 = vmatpush1.bf16.msra.mxu0 %v1821
    %2052 = vmatprep.subr.bf16.mxu0 %v1826
    %2053 = vmatpush1.bf16.msra.mxu0 %v1825
    %2054 = vmatprep.subr.bf16.mxu0 %v1830
    %2055 = vmatpush1.bf16.msra.mxu0 %v1829
    %2056 = vmatprep.subr.bf16.mxu0 %v1834
    %2057 = vmatpush1.bf16.msra.mxu0 %v1833
    %2058 = vmatprep.subr.bf16.mxu0 %v1838
    %2059 = vmatpush1.bf16.msra.mxu0 %v1837
    %2060 = vmatprep.subr.bf16.mxu0 %v1842
    %2061 = vmatpush1.bf16.msra.mxu0 %v1841
    %2062 = vmatprep.subr.bf16.mxu0 %v1846
    %2063 = vmatpush1.bf16.msra.mxu0 %v1845
    %2064 = vmatprep.subr.bf16.mxu0 %v1850
    %2065 = vmatpush1.bf16.msra.mxu0 %v1849
    %2066 = vmatprep.subr.bf16.mxu0 %v1854
    %2067 = vmatpush1.bf16.msra.mxu0 %v1853
    %2068 = vmatprep.subr.bf16.mxu0 %v1858
    %2069 = vmatpush1.bf16.msra.mxu0 %v1857
    %2070 = vmatprep.subr.bf16.mxu0 %v1862
    %2071 = vmatpush1.bf16.msra.mxu0 %v1861
    %2072 = vmatprep.subr.bf16.mxu0 %v1866
    %2073 = vmatpush1.bf16.msra.mxu0 %v1865
    %2074 = vmatprep.subr.bf16.mxu0 %v1870
    %2075 = vmatpush1.bf16.msra.mxu0 %v1869
    %2076 = vmatprep.subr.bf16.mxu0 %v1874
    %2077 = vmatpush1.bf16.msra.mxu0 %v1873
    %2078 = vmatprep.mubr.bf16.mxu0 %v1214
    %2079 = vmatmul.mubr.bf16.gmra.mrb[0].mxu0 %v1213
    %v2080 = vpop.f32.mrb[0].mxu0
    %v2081 = vadd.f32 %v2040, %v2080
    %v2082 = vpop.f32.mrb[0].mxu0
    %v2083 = vadd.f32 %v2042, %v2082
    %v2084 = vpop.f32.mrb[0].mxu0
    %v2085 = vpop.f32.mrb[0].mxu0
    %2086 = vdwg.mxu0
    %2087 = vmatprep.subr.bf16.mxu0 %v1752
    %2088 = vmatpush1.bf16.msra.mxu0 %v1751
    %2089 = vmatprep.subr.bf16.mxu0 %v1756
    %2090 = vmatpush1.bf16.msra.mxu0 %v1755
    %2091 = vmatprep.subr.bf16.mxu0 %v1760
    %2092 = vmatpush1.bf16.msra.mxu0 %v1759
    %2093 = vmatprep.subr.bf16.mxu0 %v1764
    %2094 = vmatpush1.bf16.msra.mxu0 %v1763
    %2095 = vmatprep.subr.bf16.mxu0 %v1768
    %2096 = vmatpush1.bf16.msra.mxu0 %v1767
    %2097 = vmatprep.subr.bf16.mxu0 %v1772
    %2098 = vmatpush1.bf16.msra.mxu0 %v1771
    %2099 = vmatprep.subr.bf16.mxu0 %v1776
    %2100 = vmatpush1.bf16.msra.mxu0 %v1775
    %2101 = vmatprep.subr.bf16.mxu0 %v1780
    %2102 = vmatpush1.bf16.msra.mxu0 %v1779
    %2103 = vmatprep.subr.bf16.mxu0 %v1784
    %2104 = vmatpush1.bf16.msra.mxu0 %v1783
    %2105 = vmatprep.subr.bf16.mxu0 %v1788
    %2106 = vmatpush1.bf16.msra.mxu0 %v1787
    %2107 = vmatprep.subr.bf16.mxu0 %v1792
    %2108 = vmatpush1.bf16.msra.mxu0 %v1791
    %2109 = vmatprep.subr.bf16.mxu0 %v1796
    %2110 = vmatpush1.bf16.msra.mxu0 %v1795
    %2111 = vmatprep.subr.bf16.mxu0 %v1800
    %2112 = vmatpush1.bf16.msra.mxu0 %v1799
    %2113 = vmatprep.subr.bf16.mxu0 %v1804
    %2114 = vmatpush1.bf16.msra.mxu0 %v1803
    %2115 = vmatprep.subr.bf16.mxu0 %v1808
    %2116 = vmatpush1.bf16.msra.mxu0 %v1807
    %2117 = vmatprep.subr.bf16.mxu0 %v1812
    %2118 = vmatpush1.bf16.msra.mxu0 %v1811
    %2119 = vmatprep.mubr.bf16.mxu0 %v1212
    %2120 = vmatmul.mubr.bf16.gmra.mrb[0].mxu0 %v1211
    %v2121 = vpop.f32.mrb[0].mxu0
    %v2122 = vadd.f32 %v1356, %v2121
    %v2123 = vpop.f32.mrb[0].mxu0
    %v2124 = vadd.f32 %v1360, %v2123
    %v2125 = vpop.f32.mrb[0].mxu0
    %v2126 = vpop.f32.mrb[0].mxu0
    %2127 = vdwg.mxu0
    %2128 = vmatprep.subr.bf16.mxu0 %v1816
    %2129 = vmatpush1.bf16.msra.mxu0 %v1815
    %2130 = vmatprep.subr.bf16.mxu0 %v1820
    %2131 = vmatpush1.bf16.msra.mxu0 %v1819
    %2132 = vmatprep.subr.bf16.mxu0 %v1824
    %2133 = vmatpush1.bf16.msra.mxu0 %v1823
    %2134 = vmatprep.subr.bf16.mxu0 %v1828
    %2135 = vmatpush1.bf16.msra.mxu0 %v1827
    %2136 = vmatprep.subr.bf16.mxu0 %v1832
    %2137 = vmatpush1.bf16.msra.mxu0 %v1831
    %2138 = vmatprep.subr.bf16.mxu0 %v1836
    %2139 = vmatpush1.bf16.msra.mxu0 %v1835
    %2140 = vmatprep.subr.bf16.mxu0 %v1840
    %2141 = vmatpush1.bf16.msra.mxu0 %v1839
    %2142 = vmatprep.subr.bf16.mxu0 %v1844
    %2143 = vmatpush1.bf16.msra.mxu0 %v1843
    %2144 = vmatprep.subr.bf16.mxu0 %v1848
    %2145 = vmatpush1.bf16.msra.mxu0 %v1847
    %2146 = vmatprep.subr.bf16.mxu0 %v1852
    %2147 = vmatpush1.bf16.msra.mxu0 %v1851
    %2148 = vmatprep.subr.bf16.mxu0 %v1856
    %2149 = vmatpush1.bf16.msra.mxu0 %v1855
    %2150 = vmatprep.subr.bf16.mxu0 %v1860
    %2151 = vmatpush1.bf16.msra.mxu0 %v1859
    %2152 = vmatprep.subr.bf16.mxu0 %v1864
    %2153 = vmatpush1.bf16.msra.mxu0 %v1863
    %2154 = vmatprep.subr.bf16.mxu0 %v1868
    %2155 = vmatpush1.bf16.msra.mxu0 %v1867
    %2156 = vmatprep.subr.bf16.mxu0 %v1872
    %2157 = vmatpush1.bf16.msra.mxu0 %v1871
    %2158 = vmatprep.subr.bf16.mxu0 %v1876
    %2159 = vmatpush1.bf16.msra.mxu0 %v1875
    %2160 = vmatprep.mubr.bf16.mxu0 %v1214
    %2161 = vmatmul.mubr.bf16.gmra.mrb[0].mxu0 %v1213
    %v2162 = vpop.f32.mrb[0].mxu0
    %v2163 = vadd.f32 %v2122, %v2162
    %v2164 = vpop.f32.mrb[0].mxu0
    %v2165 = vadd.f32 %v2124, %v2164
    %v2166 = vpop.f32.mrb[0].mxu0
    %v2167 = vpop.f32.mrb[0].mxu0
    %2168 = vdwg.mxu0
    %v2169 = vmax.f32 %v2081, 0.0
    %v2170 = vmax.f32 %v2083, 0.0
    %v2171 = vmax.f32 %v2163, 0.0
    %v2172 = vmax.f32 %v2165, 0.0
    %v2173 = vpack.c.bf16 %v2169, %v2169
    %v2174 = vpack.c.bf16 %v2170, %v2170
    %v2175 = vpack.c.bf16 %v2171, %v2171
    %v2176 = vpack.c.bf16 %v2172, %v2172
    %v2177 = vld [vmem:[#allocation10] sm:$0xf]
    %v2178 = vld [vmem:[#allocation10 + $0x4] sm:$0xf]
    %v2179 = vld [vmem:[#allocation10 + $0x8] sm:$0xf]
    %v2180 = vld [vmem:[#allocation10 + $0xc] sm:$0xf]
    %v2181 = vld [vmem:[#allocation10 + $0x10] sm:$0xf]
    %v2182 = vld [vmem:[#allocation10 + $0x14] sm:$0xf]
    %v2183 = vld [vmem:[#allocation10 + $0x18] sm:$0xf]
    %v2184 = vld [vmem:[#allocation10 + $0x1c] sm:$0xf]
    %v2185 = vld [vmem:[#allocation10 + $0x20] sm:$0xf]
    %v2186 = vld [vmem:[#allocation10 + $0x24] sm:$0xf]
    %v2187 = vld [vmem:[#allocation10 + $0x28] sm:$0xf]
    %v2188 = vld [vmem:[#allocation10 + $0x2c] sm:$0xf]
    %v2189 = vld [vmem:[#allocation10 + $0x30] sm:$0xf]
    %v2190 = vld [vmem:[#allocation10 + $0x34] sm:$0xf]
    %v2191 = vld [vmem:[#allocation10 + $0x38] sm:$0xf]
    %v2192 = vld [vmem:[#allocation10 + $0x3c] sm:$0xf]
    %v2193 = vld [vmem:[#allocation10 + $0x40] sm:$0xf]
    %v2194 = vld [vmem:[#allocation10 + $0x44] sm:$0xf]
    %v2195 = vld [vmem:[#allocation10 + $0x48] sm:$0xf]
    %v2196 = vld [vmem:[#allocation10 + $0x4c] sm:$0xf]
    %v2197 = vld [vmem:[#allocation10 + $0x50] sm:$0xf]
    %v2198 = vld [vmem:[#allocation10 + $0x54] sm:$0xf]
    %v2199 = vld [vmem:[#allocation10 + $0x58] sm:$0xf]
    %v2200 = vld [vmem:[#allocation10 + $0x5c] sm:$0xf]
    %v2201 = vld [vmem:[#allocation10 + $0x60] sm:$0xf]
    %v2202 = vld [vmem:[#allocation10 + $0x64] sm:$0xf]
    %v2203 = vld [vmem:[#allocation10 + $0x68] sm:$0xf]
    %v2204 = vld [vmem:[#allocation10 + $0x6c] sm:$0xf]
    %v2205 = vld [vmem:[#allocation10 + $0x70] sm:$0xf]
    %v2206 = vld [vmem:[#allocation10 + $0x74] sm:$0xf]
    %v2207 = vld [vmem:[#allocation10 + $0x78] sm:$0xf]
    %v2208 = vld [vmem:[#allocation10 + $0x7c] sm:$0xf]
    %v2209 = vld [vmem:[#allocation10 + $0x80] sm:$0xf]
    %v2210 = vld [vmem:[#allocation10 + $0x84] sm:$0xf]
    %v2211 = vld [vmem:[#allocation10 + $0x88] sm:$0xf]
    %v2212 = vld [vmem:[#allocation10 + $0x8c] sm:$0xf]
    %v2213 = vld [vmem:[#allocation10 + $0x90] sm:$0xf]
    %v2214 = vld [vmem:[#allocation10 + $0x94] sm:$0xf]
    %v2215 = vld [vmem:[#allocation10 + $0x98] sm:$0xf]
    %v2216 = vld [vmem:[#allocation10 + $0x9c] sm:$0xf]
    %v2217 = vld [vmem:[#allocation10 + $0xa0] sm:$0xf]
    %v2218 = vld [vmem:[#allocation10 + $0xa4] sm:$0xf]
    %v2219 = vld [vmem:[#allocation10 + $0xa8] sm:$0xf]
    %v2220 = vld [vmem:[#allocation10 + $0xac] sm:$0xf]
    %v2221 = vld [vmem:[#allocation10 + $0xb0] sm:$0xf]
    %v2222 = vld [vmem:[#allocation10 + $0xb4] sm:$0xf]
    %v2223 = vld [vmem:[#allocation10 + $0xb8] sm:$0xf]
    %v2224 = vld [vmem:[#allocation10 + $0xbc] sm:$0xf]
    %v2225 = vld [vmem:[#allocation10 + $0xc0] sm:$0xf]
    %v2226 = vld [vmem:[#allocation10 + $0xc4] sm:$0xf]
    %v2227 = vld [vmem:[#allocation10 + $0xc8] sm:$0xf]
    %v2228 = vld [vmem:[#allocation10 + $0xcc] sm:$0xf]
    %v2229 = vld [vmem:[#allocation10 + $0xd0] sm:$0xf]
    %v2230 = vld [vmem:[#allocation10 + $0xd4] sm:$0xf]
    %v2231 = vld [vmem:[#allocation10 + $0xd8] sm:$0xf]
    %v2232 = vld [vmem:[#allocation10 + $0xdc] sm:$0xf]
    %v2233 = vld [vmem:[#allocation10 + $0xe0] sm:$0xf]
    %v2234 = vld [vmem:[#allocation10 + $0xe4] sm:$0xf]
    %v2235 = vld [vmem:[#allocation10 + $0xe8] sm:$0xf]
    %v2236 = vld [vmem:[#allocation10 + $0xec] sm:$0xf]
    %v2237 = vld [vmem:[#allocation10 + $0xf0] sm:$0xf]
    %v2238 = vld [vmem:[#allocation10 + $0xf4] sm:$0xf]
    %v2239 = vld [vmem:[#allocation10 + $0xf8] sm:$0xf]
    %v2240 = vld [vmem:[#allocation10 + $0xfc] sm:$0xf]
    %v2241 = vld [vmem:[%s8] sm:$0x1]
    %v2243 = vlaneseq
    %v2244 = vshrl.u32 %v2243, 7
    %v2245 = vsub.s32 0, %v2244
    %v2246 = vrot.slane %v2241, %v2245
    %v2312 = vunpack.c.l.b16 %v2177
    %v2313 = vunpack.c.l.b16 %v2178
    %v2314 = vunpack.c.l.b16 %v2179
    %v2315 = vunpack.c.l.b16 %v2180
    %v2316 = vunpack.c.l.b16 %v2181
    %v2317 = vunpack.c.l.b16 %v2182
    %v2318 = vunpack.c.l.b16 %v2183
    %v2319 = vunpack.c.l.b16 %v2184
    %v2320 = vunpack.c.l.b16 %v2185
    %v2321 = vunpack.c.l.b16 %v2186
    %v2322 = vunpack.c.l.b16 %v2187
    %v2323 = vunpack.c.l.b16 %v2188
    %v2324 = vunpack.c.l.b16 %v2189
    %v2325 = vunpack.c.l.b16 %v2190
    %v2326 = vunpack.c.l.b16 %v2191
    %v2327 = vunpack.c.l.b16 %v2192
    %v2328 = vunpack.c.l.b16 %v2193
    %v2329 = vunpack.c.l.b16 %v2194
    %v2330 = vunpack.c.l.b16 %v2195
    %v2331 = vunpack.c.l.b16 %v2196
    %v2332 = vunpack.c.l.b16 %v2197
    %v2333 = vunpack.c.l.b16 %v2198
    %v2334 = vunpack.c.l.b16 %v2199
    %v2335 = vunpack.c.l.b16 %v2200
    %v2336 = vunpack.c.l.b16 %v2201
    %v2337 = vunpack.c.l.b16 %v2202
    %v2338 = vunpack.c.l.b16 %v2203
    %v2339 = vunpack.c.l.b16 %v2204
    %v2340 = vunpack.c.l.b16 %v2205
    %v2341 = vunpack.c.l.b16 %v2206
    %v2342 = vunpack.c.l.b16 %v2207
    %v2343 = vunpack.c.l.b16 %v2208
    %v2344 = vunpack.c.l.b16 %v2209
    %v2345 = vunpack.c.l.b16 %v2210
    %v2346 = vunpack.c.l.b16 %v2211
    %v2347 = vunpack.c.l.b16 %v2212
    %v2348 = vunpack.c.l.b16 %v2213
    %v2349 = vunpack.c.l.b16 %v2214
    %v2350 = vunpack.c.l.b16 %v2215
    %v2351 = vunpack.c.l.b16 %v2216
    %v2352 = vunpack.c.l.b16 %v2217
    %v2353 = vunpack.c.l.b16 %v2218
    %v2354 = vunpack.c.l.b16 %v2219
    %v2355 = vunpack.c.l.b16 %v2220
    %v2356 = vunpack.c.l.b16 %v2221
    %v2357 = vunpack.c.l.b16 %v2222
    %v2358 = vunpack.c.l.b16 %v2223
    %v2359 = vunpack.c.l.b16 %v2224
    %v2360 = vunpack.c.l.b16 %v2225
    %v2361 = vunpack.c.l.b16 %v2226
    %v2362 = vunpack.c.l.b16 %v2227
    %v2363 = vunpack.c.l.b16 %v2228
    %v2364 = vunpack.c.l.b16 %v2229
    %v2365 = vunpack.c.l.b16 %v2230
    %v2366 = vunpack.c.l.b16 %v2231
    %v2367 = vunpack.c.l.b16 %v2232
    %v2368 = vunpack.c.l.b16 %v2233
    %v2369 = vunpack.c.l.b16 %v2234
    %v2370 = vunpack.c.l.b16 %v2235
    %v2371 = vunpack.c.l.b16 %v2236
    %v2372 = vunpack.c.l.b16 %v2237
    %v2373 = vunpack.c.l.b16 %v2238
    %v2374 = vunpack.c.l.b16 %v2239
    %v2375 = vunpack.c.l.b16 %v2240
    %v2376 = vpack.c.b16 %v2313, %v2312
    %v2377 = vpack.c.b16 %v2315, %v2314
    %v2378 = vpack.c.b16 %v2317, %v2316
    %v2379 = vpack.c.b16 %v2319, %v2318
    %v2380 = vpack.c.b16 %v2321, %v2320
    %v2381 = vpack.c.b16 %v2323, %v2322
    %v2382 = vpack.c.b16 %v2325, %v2324
    %v2383 = vpack.c.b16 %v2327, %v2326
    %v2384 = vpack.c.b16 %v2329, %v2328
    %v2385 = vpack.c.b16 %v2331, %v2330
    %v2386 = vpack.c.b16 %v2333, %v2332
    %v2387 = vpack.c.b16 %v2335, %v2334
    %v2388 = vpack.c.b16 %v2337, %v2336
    %v2389 = vpack.c.b16 %v2339, %v2338
    %v2390 = vpack.c.b16 %v2341, %v2340
    %v2391 = vpack.c.b16 %v2343, %v2342
    %v2392 = vpack.c.b16 %v2345, %v2344
    %v2393 = vpack.c.b16 %v2347, %v2346
    %v2394 = vpack.c.b16 %v2349, %v2348
    %v2395 = vpack.c.b16 %v2351, %v2350
    %v2396 = vpack.c.b16 %v2353, %v2352
    %v2397 = vpack.c.b16 %v2355, %v2354
    %v2398 = vpack.c.b16 %v2357, %v2356
    %v2399 = vpack.c.b16 %v2359, %v2358
    %v2400 = vpack.c.b16 %v2361, %v2360
    %v2401 = vpack.c.b16 %v2363, %v2362
    %v2402 = vpack.c.b16 %v2365, %v2364
    %v2403 = vpack.c.b16 %v2367, %v2366
    %v2404 = vpack.c.b16 %v2369, %v2368
    %v2405 = vpack.c.b16 %v2371, %v2370
    %v2406 = vpack.c.b16 %v2373, %v2372
    %v2407 = vpack.c.b16 %v2375, %v2374
    %2440 = vmatprep.subr.bf16.mxu0 0
    %2441 = vmatpush1.bf16.msra.mxu0 %v2376
    %2442 = vmatprep.subr.bf16.mxu0 0
    %2443 = vmatpush1.bf16.msra.mxu0 %v2377
    %2444 = vmatprep.subr.bf16.mxu0 0
    %2445 = vmatpush1.bf16.msra.mxu0 %v2378
    %2446 = vmatprep.subr.bf16.mxu0 0
    %2447 = vmatpush1.bf16.msra.mxu0 %v2379
    %2448 = vmatprep.subr.bf16.mxu0 0
    %2449 = vmatpush1.bf16.msra.mxu0 %v2380
    %2450 = vmatprep.subr.bf16.mxu0 0
    %2451 = vmatpush1.bf16.msra.mxu0 %v2381
    %2452 = vmatprep.subr.bf16.mxu0 0
    %2453 = vmatpush1.bf16.msra.mxu0 %v2382
    %2454 = vmatprep.subr.bf16.mxu0 0
    %2455 = vmatpush1.bf16.msra.mxu0 %v2383
    %2456 = vmatprep.subr.bf16.mxu0 0
    %2457 = vmatpush1.bf16.msra.mxu0 %v2384
    %2458 = vmatprep.subr.bf16.mxu0 0
    %2459 = vmatpush1.bf16.msra.mxu0 %v2385
    %2460 = vmatprep.subr.bf16.mxu0 0
    %2461 = vmatpush1.bf16.msra.mxu0 %v2386
    %2462 = vmatprep.subr.bf16.mxu0 0
    %2463 = vmatpush1.bf16.msra.mxu0 %v2387
    %2464 = vmatprep.subr.bf16.mxu0 0
    %2465 = vmatpush1.bf16.msra.mxu0 %v2388
    %2466 = vmatprep.subr.bf16.mxu0 0
    %2467 = vmatpush1.bf16.msra.mxu0 %v2389
    %2468 = vmatprep.subr.bf16.mxu0 0
    %2469 = vmatpush1.bf16.msra.mxu0 %v2390
    %2470 = vmatprep.subr.bf16.mxu0 0
    %2471 = vmatpush1.bf16.msra.mxu0 %v2391
    %2472 = vmatprep.mubr.bf16.mxu0 %v2174
    %2473 = vmatmul.mubr.bf16.gmra.mrb[0].mxu0 %v2173
    %v2474 = vpop.f32.mrb[0].mxu0
    %v2475 = vadd.f32 %v2246, %v2474
    %v2476 = vpop.f32.mrb[0].mxu0
    %v2477 = vpop.f32.mrb[0].mxu0
    %v2478 = vpop.f32.mrb[0].mxu0
    %2479 = vdwg.mxu0
    %2480 = vmatprep.subr.bf16.mxu0 0
    %2481 = vmatpush1.bf16.msra.mxu0 %v2392
    %2482 = vmatprep.subr.bf16.mxu0 0
    %2483 = vmatpush1.bf16.msra.mxu0 %v2393
    %2484 = vmatprep.subr.bf16.mxu0 0
    %2485 = vmatpush1.bf16.msra.mxu0 %v2394
    %2486 = vmatprep.subr.bf16.mxu0 0
    %2487 = vmatpush1.bf16.msra.mxu0 %v2395
    %2488 = vmatprep.subr.bf16.mxu0 0
    %2489 = vmatpush1.bf16.msra.mxu0 %v2396
    %2490 = vmatprep.subr.bf16.mxu0 0
    %2491 = vmatpush1.bf16.msra.mxu0 %v2397
    %2492 = vmatprep.subr.bf16.mxu0 0
    %2493 = vmatpush1.bf16.msra.mxu0 %v2398
    %2494 = vmatprep.subr.bf16.mxu0 0
    %2495 = vmatpush1.bf16.msra.mxu0 %v2399
    %2496 = vmatprep.subr.bf16.mxu0 0
    %2497 = vmatpush1.bf16.msra.mxu0 %v2400
    %2498 = vmatprep.subr.bf16.mxu0 0
    %2499 = vmatpush1.bf16.msra.mxu0 %v2401
    %2500 = vmatprep.subr.bf16.mxu0 0
    %2501 = vmatpush1.bf16.msra.mxu0 %v2402
    %2502 = vmatprep.subr.bf16.mxu0 0
    %2503 = vmatpush1.bf16.msra.mxu0 %v2403
    %2504 = vmatprep.subr.bf16.mxu0 0
    %2505 = vmatpush1.bf16.msra.mxu0 %v2404
    %2506 = vmatprep.subr.bf16.mxu0 0
    %2507 = vmatpush1.bf16.msra.mxu0 %v2405
    %2508 = vmatprep.subr.bf16.mxu0 0
    %2509 = vmatpush1.bf16.msra.mxu0 %v2406
    %2510 = vmatprep.subr.bf16.mxu0 0
    %2511 = vmatpush1.bf16.msra.mxu0 %v2407
    %2512 = vmatprep.mubr.bf16.mxu0 %v2176
    %2513 = vmatmul.mubr.bf16.gmra.mrb[0].mxu0 %v2175
    %v2514 = vpop.f32.mrb[0].mxu0
    %v2515 = vadd.f32 %v2475, %v2514
    %v2516 = vpop.f32.mrb[0].mxu0
    %v2517 = vpop.f32.mrb[0].mxu0
    %v2518 = vpop.f32.mrb[0].mxu0
    %2519 = vdwg.mxu0
    %v2520 = vpack.c.bf16 %v2515, %v2515
    %2521 = vst [vmem:[#allocation11] sm:$0xf] %v2520
    // Predicated region
    $region58: #{tpu_custom_call.1} parent=1 // pred_check
      _
    $region59: #{tpu_custom_call.1} parent=1 // pred_check_branch
      %2523 = sbr.rel (0) target = $region61
    $region60: #{tpu_custom_call.1} parent=1 // pred_region
      %s2525 = ssub.s32 64, 64
      %2526 = vsyncadd [#allocation4], %s2525
      %s2528 = sshll.u32 [#allocation11], 4
      %s2529 = int_to_ptr.vmem [resolvable:$true] %s2528
      %2531 = dma.vmem_to_hbm [thread:$0]  %s2529, 64, %s9, [#allocation4]
    $region61: #{tpu_custom_call.1} parent=1 // pred_fallthru
      _
    // Predicated region
    $region62: #{tpu_custom_call.1} parent=1 // pred_check
      _
    $region63: #{tpu_custom_call.1} parent=1 // pred_check_branch
      %2533 = sbr.rel (0) target = $region65
    $region64: #{tpu_custom_call.1} parent=1 // pred_region
      %2534 = dma.done [#allocation4], 64
    $region65: #{tpu_custom_call.1} parent=1 // pred_fallthru
      _
    %2535 = vsyncpa [#allocation3], 1
    %2536 = vsyncpa [#allocation6], 1
    %2537 = vsyncpa [#allocation9], 1
    %2538 = vsyncpa [#allocation4], 1

</llo_original>
